<compile_context>
chip_gen: v7x
topology: tpu7x:2x2x1
jax: 0.10.0
libtpu: 0.0.40
codegen_flags: <defaults>
</compile_context>

<pallas_src>
import jax
import jax.numpy as jnp
from jax.experimental import pallas as pl
from jax.experimental.pallas import tpu as pltpu


# ----------------------------------------------------------------------------
# Fused kernel factory: all LSTM layers (wavefronted) + ReLU + FC head.
# ----------------------------------------------------------------------------
def _make_lstm_net_kernel(T, B, H, L):
    n_in = 3 + 2 * L + 2  # x, h0, c0, (w_cat, b) * L, fc_w, fc_b

    def kernel(*refs):
        x_ref, h0_ref, c0_ref = refs[0], refs[1], refs[2]
        w_refs = refs[3:3 + 2 * L]
        fcw_ref, fcb_ref = refs[3 + 2 * L], refs[3 + 2 * L + 1]
        out_ref, hn_ref, cn_ref = refs[n_in], refs[n_in + 1], refs[n_in + 2]

        x_all = x_ref[...]                                   # (B, T, Din) f32, ~2 KB

        w_cat = [w_refs[2 * l][...] for l in range(L)]       # (in_l + H, 4H) bf16
        bias = [w_refs[2 * l + 1][...] for l in range(L)]    # (1, 4H) f32 (b_ih + b_hh)

        h = [h0_ref[l].astype(jnp.float32) for l in range(L)]   # (B, H) f32 each
        c = [c0_ref[l].astype(jnp.float32) for l in range(L)]
        # (R1) inter-layer per-step outputs kept as trace-time values (no VMEM scratch).
        y = [[None] * T for _ in range(L - 1)]

        # (R3) wavefront: global step s runs layer l at timestep t = s - l, so the
        # per-layer serial chains (MXU drain + EUP latency) overlap.
        for s in range(T + L - 1):
            for l in range(L):
                t = s - l
                if not (0 <= t < T):
                    continue
                x_in = x_all[:, t, :] if l == 0 else y[l - 1][t]      # (B, in_l) f32
                # (R3) one fused MXU push: [x_in, h_{l,t-1}] @ [W_ih^T; W_hh^T]
                cat = jnp.concatenate([x_in, h[l]], axis=-1).astype(jnp.bfloat16)
                gates = jnp.dot(cat, w_cat[l],
                                preferred_element_type=jnp.float32) + bias[l]  # (B,4H) f32
                # (R2) 2 full-width activations + 1 tanh(c) instead of 5 per-gate calls.
                sig = jax.nn.sigmoid(gates)                  # i | f | . | o lanes
                tnh = jnp.tanh(gates)                        # . | . | g | . lanes
                c[l] = sig[:, H:2 * H] * c[l] + sig[:, 0:H] * tnh[:, 2 * H:3 * H]
                h[l] = sig[:, 3 * H:4 * H] * jnp.tanh(c[l])
                if l < L - 1:
                    y[l][t] = h[l]
                if t == T - 1:
                    # (R5) final states written exactly once per layer, back-to-back.
                    hn_ref[l] = h[l]
                    cn_ref[l] = c[l]
                # TODO(synk): nn.LSTM inter-layer dropout (p=0.2) is training-mode only;
                # the eval forward treats it as identity, so it is omitted.

        # Fused head: ReLU(h at last timestep of last layer) @ W_fc^T + b_fc
        h_relu = jnp.maximum(h[L - 1], 0.0)
        out_ref[...] = (jnp.dot(h_relu.astype(jnp.bfloat16), fcw_ref[...],
                                preferred_element_type=jnp.float32)
                        + fcb_ref[...]).astype(out_ref.dtype)

    return kernel


# ----------------------------------------------------------------------------
# Wrapper: one pallas_call for the whole forward (grid=(), everything resident).
# ----------------------------------------------------------------------------
def lstm_net_forward(x, h, params):
    """x: (B, T, input_dim) f32; h = (h0, c0), each (n_layers, B, hidden_dim) f32."""
    h0, c0 = h
    B, T, Din = x.shape
    L, _, H = h0.shape
    O = params["fc_w_t"].shape[-1]

    flat_w = []
    in_specs = [
        pl.BlockSpec((B, T, Din), lambda: (0, 0, 0)),   # (R4) natural layout, no XLA pre-op
        pl.BlockSpec((L, B, H), lambda: (0, 0, 0)),
        pl.BlockSpec((L, B, H), lambda: (0, 0, 0)),
    ]
    for (w_cat_t, b) in params["lstm"]:
        flat_w += [w_cat_t, b]
        in_specs += [pl.BlockSpec(w_cat_t.shape, lambda: (0, 0)),
                     pl.BlockSpec(b.shape, lambda: (0, 0))]
    in_specs += [pl.BlockSpec(params["fc_w_t"].shape, lambda: (0, 0)),
                 pl.BlockSpec(params["fc_b"].shape, lambda: (0, 0))]

    out_specs = (pl.BlockSpec((B, O), lambda: (0, 0)),
                 pl.BlockSpec((L, B, H), lambda: (0, 0, 0)),
                 pl.BlockSpec((L, B, H), lambda: (0, 0, 0)))

    out, hn, cn = pl.pallas_call(
        _make_lstm_net_kernel(T, B, H, L),
        out_shape=(jax.ShapeDtypeStruct((B, O), jnp.float32),
                   jax.ShapeDtypeStruct((L, B, H), jnp.float32),
                   jax.ShapeDtypeStruct((L, B, H), jnp.float32)),
        grid=(),                      # single invocation; footprint < 50 KB, latency-bound
        in_specs=in_specs,
        out_specs=out_specs,
        # (R1) no scratch_shapes: inter-layer sequence stays in vregs.
    )(x, h0, c0, *flat_w, params["fc_w_t"], params["fc_b"])
    return out, (hn, cn)


# ----------------------------------------------------------------------------
# Pure-JAX reference mirroring the kernel's precision contract (bf16 MXU operands
# via the same fused [x, h] @ [W_ih^T; W_hh^T], f32 accumulate + f32 elementwise).
# ----------------------------------------------------------------------------
def lstm_net_reference(x, h, params):
    h0, c0 = h
    H = h0.shape[-1]
    cur = jnp.transpose(x, (1, 0, 2))                 # (T, B, Din)
    h_fin, c_fin = [], []
    for layer, (w_cat_t, b) in enumerate(params["lstm"]):
        def step(carry, x_t, w_cat_t=w_cat_t, b=b):
            hh, cc = carry
            cat = jnp.concatenate([x_t, hh], axis=-1).astype(jnp.bfloat16)
            gates = jnp.dot(cat, w_cat_t, preferred_element_type=jnp.float32) + b
            i = jax.nn.sigmoid(gates[:, 0 * H:1 * H])
            f = jax.nn.sigmoid(gates[:, 1 * H:2 * H])
            g = jnp.tanh(gates[:, 2 * H:3 * H])
            o = jax.nn.sigmoid(gates[:, 3 * H:4 * H])
            cc = f * cc + i * g
            hh = o * jnp.tanh(cc)
            return (hh, cc), hh

        (hh, cc), ys = jax.lax.scan(step, (h0[layer], c0[layer]), cur)
        h_fin.append(hh)
        c_fin.append(cc)
        cur = ys
    last = jax.nn.relu(cur[-1])
    out = (jnp.dot(last.astype(jnp.bfloat16), params["fc_w_t"],
                   preferred_element_type=jnp.float32) + params["fc_b"])
    return out, (jnp.stack(h_fin), jnp.stack(c_fin))


# ----------------------------------------------------------------------------
# Deterministic parameter init (PyTorch-style U(-1/sqrt(H), 1/sqrt(H))).
# Per layer the matmul weight is stored pre-concatenated [W_ih^T; W_hh^T] in bf16
# (concat done ONCE here, not per call); biases fused (b_ih + b_hh) and kept f32.
# ----------------------------------------------------------------------------
def init_params(key, input_dim, hidden_dim, output_dim, n_layers):
    k = 1.0 / jnp.sqrt(jnp.float32(hidden_dim))
    params = {"lstm": []}
    for layer in range(n_layers):
        in_dim = input_dim if layer == 0 else hidden_dim
        key, k1, k2, k3, k4 = jax.random.split(key, 5)
        w_ih = jax.random.uniform(k1, (4 * hidden_dim, in_dim), jnp.float32, -k, k)
        w_hh = jax.random.uniform(k2, (4 * hidden_dim, hidden_dim), jnp.float32, -k, k)
        b_ih = jax.random.uniform(k3, (4 * hidden_dim,), jnp.float32, -k, k)
        b_hh = jax.random.uniform(k4, (4 * hidden_dim,), jnp.float32, -k, k)
        w_cat_t = jnp.concatenate([w_ih.T, w_hh.T], axis=0).astype(jnp.bfloat16)
        params["lstm"].append((w_cat_t, (b_ih + b_hh)[None, :]))
    key, k5, k6 = jax.random.split(key, 3)
    w_fc = jax.random.uniform(k5, (output_dim, hidden_dim), jnp.float32, -k, k)
    b_fc = jax.random.uniform(k6, (output_dim,), jnp.float32, -k, k)
    params["fc_w_t"] = w_fc.T.astype(jnp.bfloat16)
    params["fc_b"] = b_fc[None, :]
    return params


if __name__ == "__main__":
    input_dim, hidden_dim, output_dim, n_layers = 16, 32, 4, 2
    batch, seq = 2, 8

    key = jax.random.PRNGKey(0)
    key, kx = jax.random.split(key)
    x = jax.random.normal(kx, (batch, seq, input_dim), jnp.float32)
    h0 = jnp.zeros((n_layers, batch, hidden_dim), jnp.float32)   # init_hidden
    c0 = jnp.zeros((n_layers, batch, hidden_dim), jnp.float32)

    params = init_params(key, input_dim, hidden_dim, output_dim, n_layers)

    out, (h_n, c_n) = lstm_net_forward(x, (h0, c0), params)
    jax.block_until_ready(out)
    jax.block_until_ready(h_n)
    jax.block_until_ready(c_n)

    ref_out, (ref_h, ref_c) = lstm_net_reference(x, (h0, c0), params)

    assert out.shape == (batch, output_dim)
    assert h_n.shape == (n_layers, batch, hidden_dim)
    assert c_n.shape == (n_layers, batch, hidden_dim)
    assert jnp.allclose(out, ref_out, atol=1e-4, rtol=1e-4)
    assert jnp.allclose(h_n, ref_h, atol=1e-4, rtol=1e-4)
    assert jnp.allclose(c_n, ref_c, atol=1e-4, rtol=1e-4)

    print("KERNEL_OK")
</pallas_src>

<mosaic_0001>
module attributes {stable_mosaic.version = 11 : i64} {
  func.func @kernel(%arg0: memref<2x8x16xf32, #tpu.memory_space<vmem>>, %arg1: memref<2x2x32xf32, #tpu.memory_space<vmem>>, %arg2: memref<2x2x32xf32, #tpu.memory_space<vmem>>, %arg3: memref<48x128xbf16, #tpu.memory_space<vmem>>, %arg4: memref<1x128xf32, #tpu.memory_space<vmem>>, %arg5: memref<64x128xbf16, #tpu.memory_space<vmem>>, %arg6: memref<1x128xf32, #tpu.memory_space<vmem>>, %arg7: memref<32x4xbf16, #tpu.memory_space<vmem>>, %arg8: memref<1x4xf32, #tpu.memory_space<vmem>>, %arg9: memref<2x4xf32, #tpu.memory_space<vmem>>, %arg10: memref<2x2x32xf32, #tpu.memory_space<vmem>>, %arg11: memref<2x2x32xf32, #tpu.memory_space<vmem>>) attributes {dimension_semantics = [], scalar_prefetch = 0 : i64, scratch_operands = 0 : i64, tpu.core_type = #tpu.core_type<tc>} {
    %c0 = arith.constant 0 : index
    %c0_0 = arith.constant 0 : index
    %c0_1 = arith.constant 0 : index
    %0 = vector.load %arg0[%c0, %c0_0, %c0_1] : memref<2x8x16xf32, #tpu.memory_space<vmem>>, vector<2x8x16xf32>
    %c0_2 = arith.constant 0 : index
    %c0_3 = arith.constant 0 : index
    %1 = vector.load %arg3[%c0_2, %c0_3] : memref<48x128xbf16, #tpu.memory_space<vmem>>, vector<48x128xbf16>
    %c0_4 = arith.constant 0 : index
    %c0_5 = arith.constant 0 : index
    %2 = vector.load %arg5[%c0_4, %c0_5] : memref<64x128xbf16, #tpu.memory_space<vmem>>, vector<64x128xbf16>
    %c0_6 = arith.constant 0 : index
    %c0_7 = arith.constant 0 : index
    %3 = vector.load %arg4[%c0_6, %c0_7] : memref<1x128xf32, #tpu.memory_space<vmem>>, vector<1x128xf32>
    %c0_8 = arith.constant 0 : index
    %c0_9 = arith.constant 0 : index
    %4 = vector.load %arg6[%c0_8, %c0_9] : memref<1x128xf32, #tpu.memory_space<vmem>>, vector<1x128xf32>
    %c0_10 = arith.constant 0 : index
    %c0_11 = arith.constant 0 : index
    %c0_12 = arith.constant 0 : index
    %5 = vector.load %arg1[%c0_10, %c0_11, %c0_12] : memref<2x2x32xf32, #tpu.memory_space<vmem>>, vector<1x2x32xf32>
    %6 = vector.shape_cast %5 : vector<1x2x32xf32> to vector<2x32xf32>
    %c1 = arith.constant 1 : index
    %c0_13 = arith.constant 0 : index
    %c0_14 = arith.constant 0 : index
    %7 = vector.load %arg1[%c1, %c0_13, %c0_14] : memref<2x2x32xf32, #tpu.memory_space<vmem>>, vector<1x2x32xf32>
    %8 = vector.shape_cast %7 : vector<1x2x32xf32> to vector<2x32xf32>
    %c0_15 = arith.constant 0 : index
    %c0_16 = arith.constant 0 : index
    %c0_17 = arith.constant 0 : index
    %9 = vector.load %arg2[%c0_15, %c0_16, %c0_17] : memref<2x2x32xf32, #tpu.memory_space<vmem>>, vector<1x2x32xf32>
    %10 = vector.shape_cast %9 : vector<1x2x32xf32> to vector<2x32xf32>
    %c1_18 = arith.constant 1 : index
    %c0_19 = arith.constant 0 : index
    %c0_20 = arith.constant 0 : index
    %11 = vector.load %arg2[%c1_18, %c0_19, %c0_20] : memref<2x2x32xf32, #tpu.memory_space<vmem>>, vector<1x2x32xf32>
    %12 = vector.shape_cast %11 : vector<1x2x32xf32> to vector<2x32xf32>
    %13 = vector.extract_strided_slice %0 {offsets = [0, 0, 0], sizes = [2, 1, 16], strides = [1, 1, 1]} : vector<2x8x16xf32> to vector<2x1x16xf32>
    %14 = vector.shape_cast %13 : vector<2x1x16xf32> to vector<2x16xf32>
    %15 = tpu.concatenate %14, %6 in 1 : vector<2x16xf32>, vector<2x32xf32> -> vector<2x48xf32>
    %16 = arith.truncf %15 : vector<2x48xf32> to vector<2x48xbf16>
    %cst = arith.constant dense<0.000000e+00> : vector<2x128xf32>
    %17 = tpu.matmul %16, %1, %cst {dimension_numbers = #tpu.dot_dimension_numbers<[1], [0], [0], [1], [0, 0, 1, 1], [], []>} : vector<2x48xbf16>, vector<48x128xbf16>, vector<2x128xf32> -> vector<2x128xf32>
    %18 = vector.broadcast %3 : vector<1x128xf32> to vector<2x128xf32>
    %19 = arith.addf %17, %18 : vector<2x128xf32>
    %20 = arith.negf %19 : vector<2x128xf32>
    %21 = math.exp %20 : vector<2x128xf32>
    %cst_21 = arith.constant 1.000000e+00 : f32
    %22 = vector.broadcast %cst_21 : f32 to vector<2x128xf32>
    %23 = arith.addf %22, %21 : vector<2x128xf32>
    %24 = arith.divf %22, %23 : vector<2x128xf32>
    %25 = math.tanh %19 : vector<2x128xf32>
    %26 = vector.extract_strided_slice %24 {offsets = [0, 32], sizes = [2, 32], strides = [1, 1]} : vector<2x128xf32> to vector<2x32xf32>
    %27 = arith.mulf %26, %10 : vector<2x32xf32>
    %28 = vector.extract_strided_slice %24 {offsets = [0, 0], sizes = [2, 32], strides = [1, 1]} : vector<2x128xf32> to vector<2x32xf32>
    %29 = vector.extract_strided_slice %25 {offsets = [0, 64], sizes = [2, 32], strides = [1, 1]} : vector<2x128xf32> to vector<2x32xf32>
    %30 = arith.mulf %28, %29 : vector<2x32xf32>
    %31 = arith.addf %27, %30 : vector<2x32xf32>
    %32 = vector.extract_strided_slice %24 {offsets = [0, 96], sizes = [2, 32], strides = [1, 1]} : vector<2x128xf32> to vector<2x32xf32>
    %33 = math.tanh %31 : vector<2x32xf32>
    %34 = arith.mulf %32, %33 : vector<2x32xf32>
    %35 = vector.extract_strided_slice %0 {offsets = [0, 1, 0], sizes = [2, 1, 16], strides = [1, 1, 1]} : vector<2x8x16xf32> to vector<2x1x16xf32>
    %36 = vector.shape_cast %35 : vector<2x1x16xf32> to vector<2x16xf32>
    %37 = tpu.concatenate %36, %34 in 1 : vector<2x16xf32>, vector<2x32xf32> -> vector<2x48xf32>
    %38 = arith.truncf %37 : vector<2x48xf32> to vector<2x48xbf16>
    %cst_22 = arith.constant dense<0.000000e+00> : vector<2x128xf32>
    %39 = tpu.matmul %38, %1, %cst_22 {dimension_numbers = #tpu.dot_dimension_numbers<[1], [0], [0], [1], [0, 0, 1, 1], [], []>} : vector<2x48xbf16>, vector<48x128xbf16>, vector<2x128xf32> -> vector<2x128xf32>
    %40 = vector.broadcast %3 : vector<1x128xf32> to vector<2x128xf32>
    %41 = arith.addf %39, %40 : vector<2x128xf32>
    %42 = arith.negf %41 : vector<2x128xf32>
    %43 = math.exp %42 : vector<2x128xf32>
    %cst_23 = arith.constant 1.000000e+00 : f32
    %44 = vector.broadcast %cst_23 : f32 to vector<2x128xf32>
    %45 = arith.addf %44, %43 : vector<2x128xf32>
    %46 = arith.divf %44, %45 : vector<2x128xf32>
    %47 = math.tanh %41 : vector<2x128xf32>
    %48 = vector.extract_strided_slice %46 {offsets = [0, 32], sizes = [2, 32], strides = [1, 1]} : vector<2x128xf32> to vector<2x32xf32>
    %49 = arith.mulf %48, %31 : vector<2x32xf32>
    %50 = vector.extract_strided_slice %46 {offsets = [0, 0], sizes = [2, 32], strides = [1, 1]} : vector<2x128xf32> to vector<2x32xf32>
    %51 = vector.extract_strided_slice %47 {offsets = [0, 64], sizes = [2, 32], strides = [1, 1]} : vector<2x128xf32> to vector<2x32xf32>
    %52 = arith.mulf %50, %51 : vector<2x32xf32>
    %53 = arith.addf %49, %52 : vector<2x32xf32>
    %54 = vector.extract_strided_slice %46 {offsets = [0, 96], sizes = [2, 32], strides = [1, 1]} : vector<2x128xf32> to vector<2x32xf32>
    %55 = math.tanh %53 : vector<2x32xf32>
    %56 = arith.mulf %54, %55 : vector<2x32xf32>
    %57 = tpu.concatenate %34, %8 in 1 : vector<2x32xf32>, vector<2x32xf32> -> vector<2x64xf32>
    %58 = arith.truncf %57 : vector<2x64xf32> to vector<2x64xbf16>
    %cst_24 = arith.constant dense<0.000000e+00> : vector<2x128xf32>
    %59 = tpu.matmul %58, %2, %cst_24 {dimension_numbers = #tpu.dot_dimension_numbers<[1], [0], [0], [1], [0, 0, 1, 1], [], []>} : vector<2x64xbf16>, vector<64x128xbf16>, vector<2x128xf32> -> vector<2x128xf32>
    %60 = vector.broadcast %4 : vector<1x128xf32> to vector<2x128xf32>
    %61 = arith.addf %59, %60 : vector<2x128xf32>
    %62 = arith.negf %61 : vector<2x128xf32>
    %63 = math.exp %62 : vector<2x128xf32>
    %cst_25 = arith.constant 1.000000e+00 : f32
    %64 = vector.broadcast %cst_25 : f32 to vector<2x128xf32>
    %65 = arith.addf %64, %63 : vector<2x128xf32>
    %66 = arith.divf %64, %65 : vector<2x128xf32>
    %67 = math.tanh %61 : vector<2x128xf32>
    %68 = vector.extract_strided_slice %66 {offsets = [0, 32], sizes = [2, 32], strides = [1, 1]} : vector<2x128xf32> to vector<2x32xf32>
    %69 = arith.mulf %68, %12 : vector<2x32xf32>
    %70 = vector.extract_strided_slice %66 {offsets = [0, 0], sizes = [2, 32], strides = [1, 1]} : vector<2x128xf32> to vector<2x32xf32>
    %71 = vector.extract_strided_slice %67 {offsets = [0, 64], sizes = [2, 32], strides = [1, 1]} : vector<2x128xf32> to vector<2x32xf32>
    %72 = arith.mulf %70, %71 : vector<2x32xf32>
    %73 = arith.addf %69, %72 : vector<2x32xf32>
    %74 = vector.extract_strided_slice %66 {offsets = [0, 96], sizes = [2, 32], strides = [1, 1]} : vector<2x128xf32> to vector<2x32xf32>
    %75 = math.tanh %73 : vector<2x32xf32>
    %76 = arith.mulf %74, %75 : vector<2x32xf32>
    %77 = vector.extract_strided_slice %0 {offsets = [0, 2, 0], sizes = [2, 1, 16], strides = [1, 1, 1]} : vector<2x8x16xf32> to vector<2x1x16xf32>
    %78 = vector.shape_cast %77 : vector<2x1x16xf32> to vector<2x16xf32>
    %79 = tpu.concatenate %78, %56 in 1 : vector<2x16xf32>, vector<2x32xf32> -> vector<2x48xf32>
    %80 = arith.truncf %79 : vector<2x48xf32> to vector<2x48xbf16>
    %cst_26 = arith.constant dense<0.000000e+00> : vector<2x128xf32>
    %81 = tpu.matmul %80, %1, %cst_26 {dimension_numbers = #tpu.dot_dimension_numbers<[1], [0], [0], [1], [0, 0, 1, 1], [], []>} : vector<2x48xbf16>, vector<48x128xbf16>, vector<2x128xf32> -> vector<2x128xf32>
    %82 = vector.broadcast %3 : vector<1x128xf32> to vector<2x128xf32>
    %83 = arith.addf %81, %82 : vector<2x128xf32>
    %84 = arith.negf %83 : vector<2x128xf32>
    %85 = math.exp %84 : vector<2x128xf32>
    %cst_27 = arith.constant 1.000000e+00 : f32
    %86 = vector.broadcast %cst_27 : f32 to vector<2x128xf32>
    %87 = arith.addf %86, %85 : vector<2x128xf32>
    %88 = arith.divf %86, %87 : vector<2x128xf32>
    %89 = math.tanh %83 : vector<2x128xf32>
    %90 = vector.extract_strided_slice %88 {offsets = [0, 32], sizes = [2, 32], strides = [1, 1]} : vector<2x128xf32> to vector<2x32xf32>
    %91 = arith.mulf %90, %53 : vector<2x32xf32>
    %92 = vector.extract_strided_slice %88 {offsets = [0, 0], sizes = [2, 32], strides = [1, 1]} : vector<2x128xf32> to vector<2x32xf32>
    %93 = vector.extract_strided_slice %89 {offsets = [0, 64], sizes = [2, 32], strides = [1, 1]} : vector<2x128xf32> to vector<2x32xf32>
    %94 = arith.mulf %92, %93 : vector<2x32xf32>
    %95 = arith.addf %91, %94 : vector<2x32xf32>
    %96 = vector.extract_strided_slice %88 {offsets = [0, 96], sizes = [2, 32], strides = [1, 1]} : vector<2x128xf32> to vector<2x32xf32>
    %97 = math.tanh %95 : vector<2x32xf32>
    %98 = arith.mulf %96, %97 : vector<2x32xf32>
    %99 = tpu.concatenate %56, %76 in 1 : vector<2x32xf32>, vector<2x32xf32> -> vector<2x64xf32>
    %100 = arith.truncf %99 : vector<2x64xf32> to vector<2x64xbf16>
    %cst_28 = arith.constant dense<0.000000e+00> : vector<2x128xf32>
    %101 = tpu.matmul %100, %2, %cst_28 {dimension_numbers = #tpu.dot_dimension_numbers<[1], [0], [0], [1], [0, 0, 1, 1], [], []>} : vector<2x64xbf16>, vector<64x128xbf16>, vector<2x128xf32> -> vector<2x128xf32>
    %102 = vector.broadcast %4 : vector<1x128xf32> to vector<2x128xf32>
    %103 = arith.addf %101, %102 : vector<2x128xf32>
    %104 = arith.negf %103 : vector<2x128xf32>
    %105 = math.exp %104 : vector<2x128xf32>
    %cst_29 = arith.constant 1.000000e+00 : f32
    %106 = vector.broadcast %cst_29 : f32 to vector<2x128xf32>
    %107 = arith.addf %106, %105 : vector<2x128xf32>
    %108 = arith.divf %106, %107 : vector<2x128xf32>
    %109 = math.tanh %103 : vector<2x128xf32>
    %110 = vector.extract_strided_slice %108 {offsets = [0, 32], sizes = [2, 32], strides = [1, 1]} : vector<2x128xf32> to vector<2x32xf32>
    %111 = arith.mulf %110, %73 : vector<2x32xf32>
    %112 = vector.extract_strided_slice %108 {offsets = [0, 0], sizes = [2, 32], strides = [1, 1]} : vector<2x128xf32> to vector<2x32xf32>
    %113 = vector.extract_strided_slice %109 {offsets = [0, 64], sizes = [2, 32], strides = [1, 1]} : vector<2x128xf32> to vector<2x32xf32>
    %114 = arith.mulf %112, %113 : vector<2x32xf32>
    %115 = arith.addf %111, %114 : vector<2x32xf32>
    %116 = vector.extract_strided_slice %108 {offsets = [0, 96], sizes = [2, 32], strides = [1, 1]} : vector<2x128xf32> to vector<2x32xf32>
    %117 = math.tanh %115 : vector<2x32xf32>
    %118 = arith.mulf %116, %117 : vector<2x32xf32>
    %119 = vector.extract_strided_slice %0 {offsets = [0, 3, 0], sizes = [2, 1, 16], strides = [1, 1, 1]} : vector<2x8x16xf32> to vector<2x1x16xf32>
    %120 = vector.shape_cast %119 : vector<2x1x16xf32> to vector<2x16xf32>
    %121 = tpu.concatenate %120, %98 in 1 : vector<2x16xf32>, vector<2x32xf32> -> vector<2x48xf32>
    %122 = arith.truncf %121 : vector<2x48xf32> to vector<2x48xbf16>
    %cst_30 = arith.constant dense<0.000000e+00> : vector<2x128xf32>
    %123 = tpu.matmul %122, %1, %cst_30 {dimension_numbers = #tpu.dot_dimension_numbers<[1], [0], [0], [1], [0, 0, 1, 1], [], []>} : vector<2x48xbf16>, vector<48x128xbf16>, vector<2x128xf32> -> vector<2x128xf32>
    %124 = vector.broadcast %3 : vector<1x128xf32> to vector<2x128xf32>
    %125 = arith.addf %123, %124 : vector<2x128xf32>
    %126 = arith.negf %125 : vector<2x128xf32>
    %127 = math.exp %126 : vector<2x128xf32>
    %cst_31 = arith.constant 1.000000e+00 : f32
    %128 = vector.broadcast %cst_31 : f32 to vector<2x128xf32>
    %129 = arith.addf %128, %127 : vector<2x128xf32>
    %130 = arith.divf %128, %129 : vector<2x128xf32>
    %131 = math.tanh %125 : vector<2x128xf32>
    %132 = vector.extract_strided_slice %130 {offsets = [0, 32], sizes = [2, 32], strides = [1, 1]} : vector<2x128xf32> to vector<2x32xf32>
    %133 = arith.mulf %132, %95 : vector<2x32xf32>
    %134 = vector.extract_strided_slice %130 {offsets = [0, 0], sizes = [2, 32], strides = [1, 1]} : vector<2x128xf32> to vector<2x32xf32>
    %135 = vector.extract_strided_slice %131 {offsets = [0, 64], sizes = [2, 32], strides = [1, 1]} : vector<2x128xf32> to vector<2x32xf32>
    %136 = arith.mulf %134, %135 : vector<2x32xf32>
    %137 = arith.addf %133, %136 : vector<2x32xf32>
    %138 = vector.extract_strided_slice %130 {offsets = [0, 96], sizes = [2, 32], strides = [1, 1]} : vector<2x128xf32> to vector<2x32xf32>
    %139 = math.tanh %137 : vector<2x32xf32>
    %140 = arith.mulf %138, %139 : vector<2x32xf32>
    %141 = tpu.concatenate %98, %118 in 1 : vector<2x32xf32>, vector<2x32xf32> -> vector<2x64xf32>
    %142 = arith.truncf %141 : vector<2x64xf32> to vector<2x64xbf16>
    %cst_32 = arith.constant dense<0.000000e+00> : vector<2x128xf32>
    %143 = tpu.matmul %142, %2, %cst_32 {dimension_numbers = #tpu.dot_dimension_numbers<[1], [0], [0], [1], [0, 0, 1, 1], [], []>} : vector<2x64xbf16>, vector<64x128xbf16>, vector<2x128xf32> -> vector<2x128xf32>
    %144 = vector.broadcast %4 : vector<1x128xf32> to vector<2x128xf32>
    %145 = arith.addf %143, %144 : vector<2x128xf32>
    %146 = arith.negf %145 : vector<2x128xf32>
    %147 = math.exp %146 : vector<2x128xf32>
    %cst_33 = arith.constant 1.000000e+00 : f32
    %148 = vector.broadcast %cst_33 : f32 to vector<2x128xf32>
    %149 = arith.addf %148, %147 : vector<2x128xf32>
    %150 = arith.divf %148, %149 : vector<2x128xf32>
    %151 = math.tanh %145 : vector<2x128xf32>
    %152 = vector.extract_strided_slice %150 {offsets = [0, 32], sizes = [2, 32], strides = [1, 1]} : vector<2x128xf32> to vector<2x32xf32>
    %153 = arith.mulf %152, %115 : vector<2x32xf32>
    %154 = vector.extract_strided_slice %150 {offsets = [0, 0], sizes = [2, 32], strides = [1, 1]} : vector<2x128xf32> to vector<2x32xf32>
    %155 = vector.extract_strided_slice %151 {offsets = [0, 64], sizes = [2, 32], strides = [1, 1]} : vector<2x128xf32> to vector<2x32xf32>
    %156 = arith.mulf %154, %155 : vector<2x32xf32>
    %157 = arith.addf %153, %156 : vector<2x32xf32>
    %158 = vector.extract_strided_slice %150 {offsets = [0, 96], sizes = [2, 32], strides = [1, 1]} : vector<2x128xf32> to vector<2x32xf32>
    %159 = math.tanh %157 : vector<2x32xf32>
    %160 = arith.mulf %158, %159 : vector<2x32xf32>
    %161 = vector.extract_strided_slice %0 {offsets = [0, 4, 0], sizes = [2, 1, 16], strides = [1, 1, 1]} : vector<2x8x16xf32> to vector<2x1x16xf32>
    %162 = vector.shape_cast %161 : vector<2x1x16xf32> to vector<2x16xf32>
    %163 = tpu.concatenate %162, %140 in 1 : vector<2x16xf32>, vector<2x32xf32> -> vector<2x48xf32>
    %164 = arith.truncf %163 : vector<2x48xf32> to vector<2x48xbf16>
    %cst_34 = arith.constant dense<0.000000e+00> : vector<2x128xf32>
    %165 = tpu.matmul %164, %1, %cst_34 {dimension_numbers = #tpu.dot_dimension_numbers<[1], [0], [0], [1], [0, 0, 1, 1], [], []>} : vector<2x48xbf16>, vector<48x128xbf16>, vector<2x128xf32> -> vector<2x128xf32>
    %166 = vector.broadcast %3 : vector<1x128xf32> to vector<2x128xf32>
    %167 = arith.addf %165, %166 : vector<2x128xf32>
    %168 = arith.negf %167 : vector<2x128xf32>
    %169 = math.exp %168 : vector<2x128xf32>
    %cst_35 = arith.constant 1.000000e+00 : f32
    %170 = vector.broadcast %cst_35 : f32 to vector<2x128xf32>
    %171 = arith.addf %170, %169 : vector<2x128xf32>
    %172 = arith.divf %170, %171 : vector<2x128xf32>
    %173 = math.tanh %167 : vector<2x128xf32>
    %174 = vector.extract_strided_slice %172 {offsets = [0, 32], sizes = [2, 32], strides = [1, 1]} : vector<2x128xf32> to vector<2x32xf32>
    %175 = arith.mulf %174, %137 : vector<2x32xf32>
    %176 = vector.extract_strided_slice %172 {offsets = [0, 0], sizes = [2, 32], strides = [1, 1]} : vector<2x128xf32> to vector<2x32xf32>
    %177 = vector.extract_strided_slice %173 {offsets = [0, 64], sizes = [2, 32], strides = [1, 1]} : vector<2x128xf32> to vector<2x32xf32>
    %178 = arith.mulf %176, %177 : vector<2x32xf32>
    %179 = arith.addf %175, %178 : vector<2x32xf32>
    %180 = vector.extract_strided_slice %172 {offsets = [0, 96], sizes = [2, 32], strides = [1, 1]} : vector<2x128xf32> to vector<2x32xf32>
    %181 = math.tanh %179 : vector<2x32xf32>
    %182 = arith.mulf %180, %181 : vector<2x32xf32>
    %183 = tpu.concatenate %140, %160 in 1 : vector<2x32xf32>, vector<2x32xf32> -> vector<2x64xf32>
    %184 = arith.truncf %183 : vector<2x64xf32> to vector<2x64xbf16>
    %cst_36 = arith.constant dense<0.000000e+00> : vector<2x128xf32>
    %185 = tpu.matmul %184, %2, %cst_36 {dimension_numbers = #tpu.dot_dimension_numbers<[1], [0], [0], [1], [0, 0, 1, 1], [], []>} : vector<2x64xbf16>, vector<64x128xbf16>, vector<2x128xf32> -> vector<2x128xf32>
    %186 = vector.broadcast %4 : vector<1x128xf32> to vector<2x128xf32>
    %187 = arith.addf %185, %186 : vector<2x128xf32>
    %188 = arith.negf %187 : vector<2x128xf32>
    %189 = math.exp %188 : vector<2x128xf32>
    %cst_37 = arith.constant 1.000000e+00 : f32
    %190 = vector.broadcast %cst_37 : f32 to vector<2x128xf32>
    %191 = arith.addf %190, %189 : vector<2x128xf32>
    %192 = arith.divf %190, %191 : vector<2x128xf32>
    %193 = math.tanh %187 : vector<2x128xf32>
    %194 = vector.extract_strided_slice %192 {offsets = [0, 32], sizes = [2, 32], strides = [1, 1]} : vector<2x128xf32> to vector<2x32xf32>
    %195 = arith.mulf %194, %157 : vector<2x32xf32>
    %196 = vector.extract_strided_slice %192 {offsets = [0, 0], sizes = [2, 32], strides = [1, 1]} : vector<2x128xf32> to vector<2x32xf32>
    %197 = vector.extract_strided_slice %193 {offsets = [0, 64], sizes = [2, 32], strides = [1, 1]} : vector<2x128xf32> to vector<2x32xf32>
    %198 = arith.mulf %196, %197 : vector<2x32xf32>
    %199 = arith.addf %195, %198 : vector<2x32xf32>
    %200 = vector.extract_strided_slice %192 {offsets = [0, 96], sizes = [2, 32], strides = [1, 1]} : vector<2x128xf32> to vector<2x32xf32>
    %201 = math.tanh %199 : vector<2x32xf32>
    %202 = arith.mulf %200, %201 : vector<2x32xf32>
    %203 = vector.extract_strided_slice %0 {offsets = [0, 5, 0], sizes = [2, 1, 16], strides = [1, 1, 1]} : vector<2x8x16xf32> to vector<2x1x16xf32>
    %204 = vector.shape_cast %203 : vector<2x1x16xf32> to vector<2x16xf32>
    %205 = tpu.concatenate %204, %182 in 1 : vector<2x16xf32>, vector<2x32xf32> -> vector<2x48xf32>
    %206 = arith.truncf %205 : vector<2x48xf32> to vector<2x48xbf16>
    %cst_38 = arith.constant dense<0.000000e+00> : vector<2x128xf32>
    %207 = tpu.matmul %206, %1, %cst_38 {dimension_numbers = #tpu.dot_dimension_numbers<[1], [0], [0], [1], [0, 0, 1, 1], [], []>} : vector<2x48xbf16>, vector<48x128xbf16>, vector<2x128xf32> -> vector<2x128xf32>
    %208 = vector.broadcast %3 : vector<1x128xf32> to vector<2x128xf32>
    %209 = arith.addf %207, %208 : vector<2x128xf32>
    %210 = arith.negf %209 : vector<2x128xf32>
    %211 = math.exp %210 : vector<2x128xf32>
    %cst_39 = arith.constant 1.000000e+00 : f32
    %212 = vector.broadcast %cst_39 : f32 to vector<2x128xf32>
    %213 = arith.addf %212, %211 : vector<2x128xf32>
    %214 = arith.divf %212, %213 : vector<2x128xf32>
    %215 = math.tanh %209 : vector<2x128xf32>
    %216 = vector.extract_strided_slice %214 {offsets = [0, 32], sizes = [2, 32], strides = [1, 1]} : vector<2x128xf32> to vector<2x32xf32>
    %217 = arith.mulf %216, %179 : vector<2x32xf32>
    %218 = vector.extract_strided_slice %214 {offsets = [0, 0], sizes = [2, 32], strides = [1, 1]} : vector<2x128xf32> to vector<2x32xf32>
    %219 = vector.extract_strided_slice %215 {offsets = [0, 64], sizes = [2, 32], strides = [1, 1]} : vector<2x128xf32> to vector<2x32xf32>
    %220 = arith.mulf %218, %219 : vector<2x32xf32>
    %221 = arith.addf %217, %220 : vector<2x32xf32>
    %222 = vector.extract_strided_slice %214 {offsets = [0, 96], sizes = [2, 32], strides = [1, 1]} : vector<2x128xf32> to vector<2x32xf32>
    %223 = math.tanh %221 : vector<2x32xf32>
    %224 = arith.mulf %222, %223 : vector<2x32xf32>
    %225 = tpu.concatenate %182, %202 in 1 : vector<2x32xf32>, vector<2x32xf32> -> vector<2x64xf32>
    %226 = arith.truncf %225 : vector<2x64xf32> to vector<2x64xbf16>
    %cst_40 = arith.constant dense<0.000000e+00> : vector<2x128xf32>
    %227 = tpu.matmul %226, %2, %cst_40 {dimension_numbers = #tpu.dot_dimension_numbers<[1], [0], [0], [1], [0, 0, 1, 1], [], []>} : vector<2x64xbf16>, vector<64x128xbf16>, vector<2x128xf32> -> vector<2x128xf32>
    %228 = vector.broadcast %4 : vector<1x128xf32> to vector<2x128xf32>
    %229 = arith.addf %227, %228 : vector<2x128xf32>
    %230 = arith.negf %229 : vector<2x128xf32>
    %231 = math.exp %230 : vector<2x128xf32>
    %cst_41 = arith.constant 1.000000e+00 : f32
    %232 = vector.broadcast %cst_41 : f32 to vector<2x128xf32>
    %233 = arith.addf %232, %231 : vector<2x128xf32>
    %234 = arith.divf %232, %233 : vector<2x128xf32>
    %235 = math.tanh %229 : vector<2x128xf32>
    %236 = vector.extract_strided_slice %234 {offsets = [0, 32], sizes = [2, 32], strides = [1, 1]} : vector<2x128xf32> to vector<2x32xf32>
    %237 = arith.mulf %236, %199 : vector<2x32xf32>
    %238 = vector.extract_strided_slice %234 {offsets = [0, 0], sizes = [2, 32], strides = [1, 1]} : vector<2x128xf32> to vector<2x32xf32>
    %239 = vector.extract_strided_slice %235 {offsets = [0, 64], sizes = [2, 32], strides = [1, 1]} : vector<2x128xf32> to vector<2x32xf32>
    %240 = arith.mulf %238, %239 : vector<2x32xf32>
    %241 = arith.addf %237, %240 : vector<2x32xf32>
    %242 = vector.extract_strided_slice %234 {offsets = [0, 96], sizes = [2, 32], strides = [1, 1]} : vector<2x128xf32> to vector<2x32xf32>
    %243 = math.tanh %241 : vector<2x32xf32>
    %244 = arith.mulf %242, %243 : vector<2x32xf32>
    %245 = vector.extract_strided_slice %0 {offsets = [0, 6, 0], sizes = [2, 1, 16], strides = [1, 1, 1]} : vector<2x8x16xf32> to vector<2x1x16xf32>
    %246 = vector.shape_cast %245 : vector<2x1x16xf32> to vector<2x16xf32>
    %247 = tpu.concatenate %246, %224 in 1 : vector<2x16xf32>, vector<2x32xf32> -> vector<2x48xf32>
    %248 = arith.truncf %247 : vector<2x48xf32> to vector<2x48xbf16>
    %cst_42 = arith.constant dense<0.000000e+00> : vector<2x128xf32>
    %249 = tpu.matmul %248, %1, %cst_42 {dimension_numbers = #tpu.dot_dimension_numbers<[1], [0], [0], [1], [0, 0, 1, 1], [], []>} : vector<2x48xbf16>, vector<48x128xbf16>, vector<2x128xf32> -> vector<2x128xf32>
    %250 = vector.broadcast %3 : vector<1x128xf32> to vector<2x128xf32>
    %251 = arith.addf %249, %250 : vector<2x128xf32>
    %252 = arith.negf %251 : vector<2x128xf32>
    %253 = math.exp %252 : vector<2x128xf32>
    %cst_43 = arith.constant 1.000000e+00 : f32
    %254 = vector.broadcast %cst_43 : f32 to vector<2x128xf32>
    %255 = arith.addf %254, %253 : vector<2x128xf32>
    %256 = arith.divf %254, %255 : vector<2x128xf32>
    %257 = math.tanh %251 : vector<2x128xf32>
    %258 = vector.extract_strided_slice %256 {offsets = [0, 32], sizes = [2, 32], strides = [1, 1]} : vector<2x128xf32> to vector<2x32xf32>
    %259 = arith.mulf %258, %221 : vector<2x32xf32>
    %260 = vector.extract_strided_slice %256 {offsets = [0, 0], sizes = [2, 32], strides = [1, 1]} : vector<2x128xf32> to vector<2x32xf32>
    %261 = vector.extract_strided_slice %257 {offsets = [0, 64], sizes = [2, 32], strides = [1, 1]} : vector<2x128xf32> to vector<2x32xf32>
    %262 = arith.mulf %260, %261 : vector<2x32xf32>
    %263 = arith.addf %259, %262 : vector<2x32xf32>
    %264 = vector.extract_strided_slice %256 {offsets = [0, 96], sizes = [2, 32], strides = [1, 1]} : vector<2x128xf32> to vector<2x32xf32>
    %265 = math.tanh %263 : vector<2x32xf32>
    %266 = arith.mulf %264, %265 : vector<2x32xf32>
    %267 = tpu.concatenate %224, %244 in 1 : vector<2x32xf32>, vector<2x32xf32> -> vector<2x64xf32>
    %268 = arith.truncf %267 : vector<2x64xf32> to vector<2x64xbf16>
    %cst_44 = arith.constant dense<0.000000e+00> : vector<2x128xf32>
    %269 = tpu.matmul %268, %2, %cst_44 {dimension_numbers = #tpu.dot_dimension_numbers<[1], [0], [0], [1], [0, 0, 1, 1], [], []>} : vector<2x64xbf16>, vector<64x128xbf16>, vector<2x128xf32> -> vector<2x128xf32>
    %270 = vector.broadcast %4 : vector<1x128xf32> to vector<2x128xf32>
    %271 = arith.addf %269, %270 : vector<2x128xf32>
    %272 = arith.negf %271 : vector<2x128xf32>
    %273 = math.exp %272 : vector<2x128xf32>
    %cst_45 = arith.constant 1.000000e+00 : f32
    %274 = vector.broadcast %cst_45 : f32 to vector<2x128xf32>
    %275 = arith.addf %274, %273 : vector<2x128xf32>
    %276 = arith.divf %274, %275 : vector<2x128xf32>
    %277 = math.tanh %271 : vector<2x128xf32>
    %278 = vector.extract_strided_slice %276 {offsets = [0, 32], sizes = [2, 32], strides = [1, 1]} : vector<2x128xf32> to vector<2x32xf32>
    %279 = arith.mulf %278, %241 : vector<2x32xf32>
    %280 = vector.extract_strided_slice %276 {offsets = [0, 0], sizes = [2, 32], strides = [1, 1]} : vector<2x128xf32> to vector<2x32xf32>
    %281 = vector.extract_strided_slice %277 {offsets = [0, 64], sizes = [2, 32], strides = [1, 1]} : vector<2x128xf32> to vector<2x32xf32>
    %282 = arith.mulf %280, %281 : vector<2x32xf32>
    %283 = arith.addf %279, %282 : vector<2x32xf32>
    %284 = vector.extract_strided_slice %276 {offsets = [0, 96], sizes = [2, 32], strides = [1, 1]} : vector<2x128xf32> to vector<2x32xf32>
    %285 = math.tanh %283 : vector<2x32xf32>
    %286 = arith.mulf %284, %285 : vector<2x32xf32>
    %287 = vector.extract_strided_slice %0 {offsets = [0, 7, 0], sizes = [2, 1, 16], strides = [1, 1, 1]} : vector<2x8x16xf32> to vector<2x1x16xf32>
    %288 = vector.shape_cast %287 : vector<2x1x16xf32> to vector<2x16xf32>
    %289 = tpu.concatenate %288, %266 in 1 : vector<2x16xf32>, vector<2x32xf32> -> vector<2x48xf32>
    %290 = arith.truncf %289 : vector<2x48xf32> to vector<2x48xbf16>
    %cst_46 = arith.constant dense<0.000000e+00> : vector<2x128xf32>
    %291 = tpu.matmul %290, %1, %cst_46 {dimension_numbers = #tpu.dot_dimension_numbers<[1], [0], [0], [1], [0, 0, 1, 1], [], []>} : vector<2x48xbf16>, vector<48x128xbf16>, vector<2x128xf32> -> vector<2x128xf32>
    %292 = vector.broadcast %3 : vector<1x128xf32> to vector<2x128xf32>
    %293 = arith.addf %291, %292 : vector<2x128xf32>
    %294 = arith.negf %293 : vector<2x128xf32>
    %295 = math.exp %294 : vector<2x128xf32>
    %cst_47 = arith.constant 1.000000e+00 : f32
    %296 = vector.broadcast %cst_47 : f32 to vector<2x128xf32>
    %297 = arith.addf %296, %295 : vector<2x128xf32>
    %298 = arith.divf %296, %297 : vector<2x128xf32>
    %299 = math.tanh %293 : vector<2x128xf32>
    %300 = vector.extract_strided_slice %298 {offsets = [0, 32], sizes = [2, 32], strides = [1, 1]} : vector<2x128xf32> to vector<2x32xf32>
    %301 = arith.mulf %300, %263 : vector<2x32xf32>
    %302 = vector.extract_strided_slice %298 {offsets = [0, 0], sizes = [2, 32], strides = [1, 1]} : vector<2x128xf32> to vector<2x32xf32>
    %303 = vector.extract_strided_slice %299 {offsets = [0, 64], sizes = [2, 32], strides = [1, 1]} : vector<2x128xf32> to vector<2x32xf32>
    %304 = arith.mulf %302, %303 : vector<2x32xf32>
    %305 = arith.addf %301, %304 : vector<2x32xf32>
    %306 = vector.extract_strided_slice %298 {offsets = [0, 96], sizes = [2, 32], strides = [1, 1]} : vector<2x128xf32> to vector<2x32xf32>
    %307 = math.tanh %305 : vector<2x32xf32>
    %308 = arith.mulf %306, %307 : vector<2x32xf32>
    %c0_48 = arith.constant 0 : index
    %c0_49 = arith.constant 0 : index
    %c0_50 = arith.constant 0 : index
    %309 = vector.load %arg10[%c0_48, %c0_49, %c0_50] : memref<2x2x32xf32, #tpu.memory_space<vmem>>, vector<1x2x32xf32>
    %310 = vector.shape_cast %309 : vector<1x2x32xf32> to vector<2x32xf32>
    %311 = vector.shape_cast %308 : vector<2x32xf32> to vector<1x2x32xf32>
    tpu.vector_store %arg10[%c0_48, %c0_49, %c0_50], %311 {strides = array<i32>} : memref<2x2x32xf32, #tpu.memory_space<vmem>>, vector<1x2x32xf32>,
    %c0_51 = arith.constant 0 : index
    %c0_52 = arith.constant 0 : index
    %c0_53 = arith.constant 0 : index
    %312 = vector.load %arg11[%c0_51, %c0_52, %c0_53] : memref<2x2x32xf32, #tpu.memory_space<vmem>>, vector<1x2x32xf32>
    %313 = vector.shape_cast %312 : vector<1x2x32xf32> to vector<2x32xf32>
    %314 = vector.shape_cast %305 : vector<2x32xf32> to vector<1x2x32xf32>
    tpu.vector_store %arg11[%c0_51, %c0_52, %c0_53], %314 {strides = array<i32>} : memref<2x2x32xf32, #tpu.memory_space<vmem>>, vector<1x2x32xf32>,
    %315 = tpu.concatenate %266, %286 in 1 : vector<2x32xf32>, vector<2x32xf32> -> vector<2x64xf32>
    %316 = arith.truncf %315 : vector<2x64xf32> to vector<2x64xbf16>
    %cst_54 = arith.constant dense<0.000000e+00> : vector<2x128xf32>
    %317 = tpu.matmul %316, %2, %cst_54 {dimension_numbers = #tpu.dot_dimension_numbers<[1], [0], [0], [1], [0, 0, 1, 1], [], []>} : vector<2x64xbf16>, vector<64x128xbf16>, vector<2x128xf32> -> vector<2x128xf32>
    %318 = vector.broadcast %4 : vector<1x128xf32> to vector<2x128xf32>
    %319 = arith.addf %317, %318 : vector<2x128xf32>
    %320 = arith.negf %319 : vector<2x128xf32>
    %321 = math.exp %320 : vector<2x128xf32>
    %cst_55 = arith.constant 1.000000e+00 : f32
    %322 = vector.broadcast %cst_55 : f32 to vector<2x128xf32>
    %323 = arith.addf %322, %321 : vector<2x128xf32>
    %324 = arith.divf %322, %323 : vector<2x128xf32>
    %325 = math.tanh %319 : vector<2x128xf32>
    %326 = vector.extract_strided_slice %324 {offsets = [0, 32], sizes = [2, 32], strides = [1, 1]} : vector<2x128xf32> to vector<2x32xf32>
    %327 = arith.mulf %326, %283 : vector<2x32xf32>
    %328 = vector.extract_strided_slice %324 {offsets = [0, 0], sizes = [2, 32], strides = [1, 1]} : vector<2x128xf32> to vector<2x32xf32>
    %329 = vector.extract_strided_slice %325 {offsets = [0, 64], sizes = [2, 32], strides = [1, 1]} : vector<2x128xf32> to vector<2x32xf32>
    %330 = arith.mulf %328, %329 : vector<2x32xf32>
    %331 = arith.addf %327, %330 : vector<2x32xf32>
    %332 = vector.extract_strided_slice %324 {offsets = [0, 96], sizes = [2, 32], strides = [1, 1]} : vector<2x128xf32> to vector<2x32xf32>
    %333 = math.tanh %331 : vector<2x32xf32>
    %334 = arith.mulf %332, %333 : vector<2x32xf32>
    %335 = tpu.concatenate %308, %334 in 1 : vector<2x32xf32>, vector<2x32xf32> -> vector<2x64xf32>
    %336 = arith.truncf %335 : vector<2x64xf32> to vector<2x64xbf16>
    %cst_56 = arith.constant dense<0.000000e+00> : vector<2x128xf32>
    %337 = tpu.matmul %336, %2, %cst_56 {dimension_numbers = #tpu.dot_dimension_numbers<[1], [0], [0], [1], [0, 0, 1, 1], [], []>} : vector<2x64xbf16>, vector<64x128xbf16>, vector<2x128xf32> -> vector<2x128xf32>
    %338 = vector.broadcast %4 : vector<1x128xf32> to vector<2x128xf32>
    %339 = arith.addf %337, %338 : vector<2x128xf32>
    %340 = arith.negf %339 : vector<2x128xf32>
    %341 = math.exp %340 : vector<2x128xf32>
    %cst_57 = arith.constant 1.000000e+00 : f32
    %342 = vector.broadcast %cst_57 : f32 to vector<2x128xf32>
    %343 = arith.addf %342, %341 : vector<2x128xf32>
    %344 = arith.divf %342, %343 : vector<2x128xf32>
    %345 = math.tanh %339 : vector<2x128xf32>
    %346 = vector.extract_strided_slice %344 {offsets = [0, 32], sizes = [2, 32], strides = [1, 1]} : vector<2x128xf32> to vector<2x32xf32>
    %347 = arith.mulf %346, %331 : vector<2x32xf32>
    %348 = vector.extract_strided_slice %344 {offsets = [0, 0], sizes = [2, 32], strides = [1, 1]} : vector<2x128xf32> to vector<2x32xf32>
    %349 = vector.extract_strided_slice %345 {offsets = [0, 64], sizes = [2, 32], strides = [1, 1]} : vector<2x128xf32> to vector<2x32xf32>
    %350 = arith.mulf %348, %349 : vector<2x32xf32>
    %351 = arith.addf %347, %350 : vector<2x32xf32>
    %352 = vector.extract_strided_slice %344 {offsets = [0, 96], sizes = [2, 32], strides = [1, 1]} : vector<2x128xf32> to vector<2x32xf32>
    %353 = math.tanh %351 : vector<2x32xf32>
    %354 = arith.mulf %352, %353 : vector<2x32xf32>
    %c1_58 = arith.constant 1 : index
    %c0_59 = arith.constant 0 : index
    %c0_60 = arith.constant 0 : index
    %355 = vector.load %arg10[%c1_58, %c0_59, %c0_60] : memref<2x2x32xf32, #tpu.memory_space<vmem>>, vector<1x2x32xf32>
    %356 = vector.shape_cast %355 : vector<1x2x32xf32> to vector<2x32xf32>
    %357 = vector.shape_cast %354 : vector<2x32xf32> to vector<1x2x32xf32>
    tpu.vector_store %arg10[%c1_58, %c0_59, %c0_60], %357 {strides = array<i32>} : memref<2x2x32xf32, #tpu.memory_space<vmem>>, vector<1x2x32xf32>,
    %c1_61 = arith.constant 1 : index
    %c0_62 = arith.constant 0 : index
    %c0_63 = arith.constant 0 : index
    %358 = vector.load %arg11[%c1_61, %c0_62, %c0_63] : memref<2x2x32xf32, #tpu.memory_space<vmem>>, vector<1x2x32xf32>
    %359 = vector.shape_cast %358 : vector<1x2x32xf32> to vector<2x32xf32>
    %360 = vector.shape_cast %351 : vector<2x32xf32> to vector<1x2x32xf32>
    tpu.vector_store %arg11[%c1_61, %c0_62, %c0_63], %360 {strides = array<i32>} : memref<2x2x32xf32, #tpu.memory_space<vmem>>, vector<1x2x32xf32>,
    %cst_64 = arith.constant 0.000000e+00 : f32
    %361 = vector.broadcast %cst_64 : f32 to vector<2x32xf32>
    %362 = arith.maximumf %354, %361 : vector<2x32xf32>
    %363 = arith.truncf %362 : vector<2x32xf32> to vector<2x32xbf16>
    %c0_65 = arith.constant 0 : index
    %c0_66 = arith.constant 0 : index
    %364 = vector.load %arg7[%c0_65, %c0_66] : memref<32x4xbf16, #tpu.memory_space<vmem>>, vector<32x4xbf16>
    %cst_67 = arith.constant dense<0.000000e+00> : vector<2x4xf32>
    %365 = tpu.matmul %363, %364, %cst_67 {dimension_numbers = #tpu.dot_dimension_numbers<[1], [0], [0], [1], [0, 0, 1, 1], [], []>} : vector<2x32xbf16>, vector<32x4xbf16>, vector<2x4xf32> -> vector<2x4xf32>
    %c0_68 = arith.constant 0 : index
    %c0_69 = arith.constant 0 : index
    %366 = vector.load %arg8[%c0_68, %c0_69] : memref<1x4xf32, #tpu.memory_space<vmem>>, vector<1x4xf32>
    %367 = vector.broadcast %366 : vector<1x4xf32> to vector<2x4xf32>
    %368 = arith.addf %365, %367 : vector<2x4xf32>
    %c0_70 = arith.constant 0 : index
    %c0_71 = arith.constant 0 : index
    %369 = vector.load %arg9[%c0_70, %c0_71] : memref<2x4xf32, #tpu.memory_space<vmem>>, vector<2x4xf32>
    tpu.vector_store %arg9[%c0_70, %c0_71], %368 {strides = array<i32>} : memref<2x4xf32, #tpu.memory_space<vmem>>, vector<2x4xf32>,
    return
  }
}

</mosaic_0001>

<llo_original>
// kernel: tpu_custom_call.1
$region0: #{tpu_custom_call.1}
  #allocation0 [shape = 'u32[]', space=smem, size = 0x4, offset = 0x4, fixed_abs, tag = 'smem constant byte address 0x4 - core index']
  #allocation1 [shape = 'u32[144,128]{1,0:T(1,128)}', space=vmem, size = 0x12000, scoped, tag = 'internal scratch']
  %s0 = inlined_call_operand.hbm [shape: f32[2,8,16], index: 0, kind: input, shape index: {}]
  %s1 = inlined_call_operand.vmem [shape: f32[2,2,32], index: 1, kind: input, shape index: {}]
  %s2 = inlined_call_operand.hbm [shape: f32[2,2,32], index: 2, kind: input, shape index: {}]
  %s3 = inlined_call_operand.hbm [shape: bf16[48,128], index: 3, kind: input, shape index: {}]
  %s4 = inlined_call_operand.hbm [shape: f32[1,128], index: 4, kind: input, shape index: {}]
  %s5 = inlined_call_operand.vmem [shape: bf16[64,128], index: 5, kind: input, shape index: {}]
  %s6 = inlined_call_operand.vmem [shape: f32[1,128], index: 6, kind: input, shape index: {}]
  %s7 = inlined_call_operand.vmem [shape: bf16[32,4], index: 7, kind: input, shape index: {}]
  %s8 = inlined_call_operand.vmem [shape: f32[1,4], index: 8, kind: input, shape index: {}]
  %s9 = inlined_call_operand.hbm [shape: f32[2,4], index: 9, kind: output, shape index: {0}]
  %s10 = inlined_call_operand.hbm [shape: f32[2,2,32], index: 10, kind: output, shape index: {1}]
  %s11 = inlined_call_operand.hbm [shape: f32[2,2,32], index: 11, kind: output, shape index: {2}]
  %12 = xla_tuple %s9, %s10, %s11
  %s13 = sld [smem:[#allocation0]]
  $region78: #{tpu_custom_call.1} parent=0
    _
  %s15 = ssub.s32 1, %s13
  %s16 = scalar_select 0, %s15, %s13
  $region1: #{tpu_custom_call.1} parent=0
    #allocation2 [shape = 'u8[8192]{0}', space=vmem, size = 0x2000, scoped, tag = 'input window, operand 0, single buffered']
    #allocation3 [shape = 's32[1]{0}', space=sflag, size = 0x4, scoped, tag = 'scoped memory for tpu_custom_call.1']
    #allocation4 [shape = 's32[1]{0}', space=sflag, size = 0x4, scoped, tag = 'scoped memory for tpu_custom_call.1']
    #allocation5 [shape = 'u8[2048]{0}', space=vmem, size = 0x800, scoped, tag = 'input window, operand 2, single buffered']
    #allocation6 [shape = 's32[1]{0}', space=sflag, size = 0x4, scoped, tag = 'scoped memory for tpu_custom_call.1']
    #allocation7 [shape = 'u8[12288]{0}', space=vmem, size = 0x3000, scoped, tag = 'input window, operand 3, single buffered']
    #allocation8 [shape = 'u8[512]{0}', space=vmem, size = 0x400, scoped, tag = 'input window, operand 4, single buffered']
    #allocation9 [shape = 's32[1]{0}', space=sflag, size = 0x4, scoped, tag = 'scoped memory for tpu_custom_call.1']
    #allocation10 [shape = 'u8[1024]{0}', space=vmem, size = 0x400, scoped, tag = 'output window, operand 0, single buffered']
    #allocation11 [shape = 'u8[2048]{0}', space=vmem, size = 0x800, scoped, tag = 'output window, operand 1, single buffered']
    #allocation12 [shape = 's32[1]{0}', space=sflag, size = 0x4, scoped, tag = 'scoped memory for tpu_custom_call.1']
    #allocation13 [shape = 'u8[2048]{0}', space=vmem, size = 0x800, scoped, tag = 'output window, operand 2, single buffered']
    %17 = vsyncpa [#allocation3], 0
    %18 = vsyncpa [#allocation6], 0
    %19 = vsyncpa [#allocation9], 0
    %20 = vsyncpa [#allocation4], 0
    %21 = vsyncpa [#allocation12], 0
    // Predicated region
    $region2: #{tpu_custom_call.1} parent=1 // pred_check
      _
    $region3: #{tpu_custom_call.1} parent=1 // pred_check_branch
      %23 = sbr.rel (0) target = $region5
    $region4: #{tpu_custom_call.1} parent=1 // pred_region
      %s25 = ssub.s32 256, 256
      %26 = vsyncadd [#allocation3], %s25
      %s27 = sshll.u32 [#allocation2], 4
      %s28 = int_to_ptr.vmem [resolvable:$true] %s27
      %33 = dma.hbm_to_vmem [thread:$0]  %s0, 256, %s28, [#allocation3], 128, 128, 8
    $region5: #{tpu_custom_call.1} parent=1 // pred_fallthru
      _
    // Predicated region
    $region6: #{tpu_custom_call.1} parent=1 // pred_check
      _
    $region7: #{tpu_custom_call.1} parent=1 // pred_check_branch
      %35 = sbr.rel (0) target = $region9
    $region8: #{tpu_custom_call.1} parent=1 // pred_region
      _
    $region9: #{tpu_custom_call.1} parent=1 // pred_fallthru
      _
    // Predicated region
    $region10: #{tpu_custom_call.1} parent=1 // pred_check
      _
    $region11: #{tpu_custom_call.1} parent=1 // pred_check_branch
      %37 = sbr.rel (0) target = $region13
    $region12: #{tpu_custom_call.1} parent=1 // pred_region
      %s39 = ssub.s32 64, 64
      %40 = vsyncadd [#allocation6], %s39
      %s41 = sshll.u32 [#allocation5], 4
      %s42 = int_to_ptr.vmem [resolvable:$true] %s41
      %47 = dma.hbm_to_vmem [thread:$0]  %s2, 64, %s42, [#allocation6], 32, 32, 2
    $region13: #{tpu_custom_call.1} parent=1 // pred_fallthru
      _
    // Predicated region
    $region14: #{tpu_custom_call.1} parent=1 // pred_check
      _
    $region15: #{tpu_custom_call.1} parent=1 // pred_check_branch
      %49 = sbr.rel (0) target = $region17
    $region16: #{tpu_custom_call.1} parent=1 // pred_region
      %s51 = ssub.s32 384, 384
      %52 = vsyncadd [#allocation6], %s51
      %s53 = sshll.u32 [#allocation7], 4
      %s54 = int_to_ptr.vmem [resolvable:$true] %s53
      %59 = dma.hbm_to_vmem [thread:$0]  %s3, 384, %s54, [#allocation6], 64, 64, 4
    $region17: #{tpu_custom_call.1} parent=1 // pred_fallthru
      _
    // Predicated region
    $region18: #{tpu_custom_call.1} parent=1 // pred_check
      _
    $region19: #{tpu_custom_call.1} parent=1 // pred_check_branch
      %61 = sbr.rel (0) target = $region21
    $region20: #{tpu_custom_call.1} parent=1 // pred_region
      %s63 = ssub.s32 16, 16
      %64 = vsyncadd [#allocation9], %s63
      %s66 = sshll.u32 [#allocation8], 4
      %s67 = int_to_ptr.vmem [resolvable:$true] %s66
      %69 = dma.hbm_to_vmem [thread:$0]  %s4, 16, %s67, [#allocation9]
    $region21: #{tpu_custom_call.1} parent=1 // pred_fallthru
      _
    // Predicated region
    $region22: #{tpu_custom_call.1} parent=1 // pred_check
      _
    $region23: #{tpu_custom_call.1} parent=1 // pred_check_branch
      %71 = sbr.rel (0) target = $region25
    $region24: #{tpu_custom_call.1} parent=1 // pred_region
      _
    $region25: #{tpu_custom_call.1} parent=1 // pred_fallthru
      _
    // Predicated region
    $region26: #{tpu_custom_call.1} parent=1 // pred_check
      _
    $region27: #{tpu_custom_call.1} parent=1 // pred_check_branch
      %73 = sbr.rel (0) target = $region29
    $region28: #{tpu_custom_call.1} parent=1 // pred_region
      _
    $region29: #{tpu_custom_call.1} parent=1 // pred_fallthru
      _
    // Predicated region
    $region30: #{tpu_custom_call.1} parent=1 // pred_check
      _
    $region31: #{tpu_custom_call.1} parent=1 // pred_check_branch
      %75 = sbr.rel (0) target = $region33
    $region32: #{tpu_custom_call.1} parent=1 // pred_region
      _
    $region33: #{tpu_custom_call.1} parent=1 // pred_fallthru
      _
    // Predicated region
    $region34: #{tpu_custom_call.1} parent=1 // pred_check
      _
    $region35: #{tpu_custom_call.1} parent=1 // pred_check_branch
      %77 = sbr.rel (0) target = $region37
    $region36: #{tpu_custom_call.1} parent=1 // pred_region
      _
    $region37: #{tpu_custom_call.1} parent=1 // pred_fallthru
      _
    // Predicated region
    $region38: #{tpu_custom_call.1} parent=1 // pred_check
      _
    $region39: #{tpu_custom_call.1} parent=1 // pred_check_branch
      %79 = sbr.rel (0) target = $region41
    $region40: #{tpu_custom_call.1} parent=1 // pred_region
      %80 = dma.done [#allocation3], 256
    $region41: #{tpu_custom_call.1} parent=1 // pred_fallthru
      _
    // Predicated region
    $region42: #{tpu_custom_call.1} parent=1 // pred_check
      _
    $region43: #{tpu_custom_call.1} parent=1 // pred_check_branch
      %82 = sbr.rel (0) target = $region45
    $region44: #{tpu_custom_call.1} parent=1 // pred_region
      %83 = dma.done [#allocation6], 64
    $region45: #{tpu_custom_call.1} parent=1 // pred_fallthru
      _
    // Predicated region
    $region46: #{tpu_custom_call.1} parent=1 // pred_check
      _
    $region47: #{tpu_custom_call.1} parent=1 // pred_check_branch
      %85 = sbr.rel (0) target = $region49
    $region48: #{tpu_custom_call.1} parent=1 // pred_region
      %86 = dma.done [#allocation6], 384
    $region49: #{tpu_custom_call.1} parent=1 // pred_fallthru
      _
    // Predicated region
    $region50: #{tpu_custom_call.1} parent=1 // pred_check
      _
    $region51: #{tpu_custom_call.1} parent=1 // pred_check_branch
      %88 = sbr.rel (0) target = $region53
    $region52: #{tpu_custom_call.1} parent=1 // pred_region
      %89 = dma.done [#allocation9], 16
    $region53: #{tpu_custom_call.1} parent=1 // pred_fallthru
      _
    %v91 = vld [vmem:[#allocation2] sm:$0xff]
    %v92 = vld [vmem:[#allocation2 + $0x8] sm:$0xff]
    %v93 = vld [vmem:[#allocation7] sm:$0xf]
    %v94 = vld [vmem:[#allocation7 + $0x4] sm:$0xf]
    %v95 = vld [vmem:[#allocation7 + $0x8] sm:$0xf]
    %v96 = vld [vmem:[#allocation7 + $0xc] sm:$0xf]
    %v97 = vld [vmem:[#allocation7 + $0x10] sm:$0xf]
    %v98 = vld [vmem:[#allocation7 + $0x14] sm:$0xf]
    %v99 = vld [vmem:[%s5] sm:$0xf]
    %v100 = vld [vmem:[%s5 + $0x4] sm:$0xf]
    %v101 = vld [vmem:[%s5 + $0x8] sm:$0xf]
    %v102 = vld [vmem:[%s5 + $0xc] sm:$0xf]
    %v103 = vld [vmem:[%s5 + $0x10] sm:$0xf]
    %v104 = vld [vmem:[%s5 + $0x14] sm:$0xf]
    %v105 = vld [vmem:[%s5 + $0x18] sm:$0xf]
    %v106 = vld [vmem:[%s5 + $0x1c] sm:$0xf]
    %v107 = vld [vmem:[#allocation8] sm:$0x1]
    %v108 = vld [vmem:[%s6] sm:$0x1]
    %v109 = vld [vmem:[%s1] sm:$0x3]
    %s110 = scalar_lea.vmem %s1, 2
    %v111 = vld [vmem:[%s110] sm:$0x3]
    %v112 = vld [vmem:[#allocation5] sm:$0x3]
    %s113 = scalar_lea.vmem [#allocation5], 2
    %v114 = vld [vmem:[%s113] sm:$0x3]
    %v117 = vrot.slane %v92, 7
    %vm118 = vcmask 1041409
    %v119 = vsel %vm118, %v117, %v91
    %122 = vrot.lane.b32.xlu0 %v109, 16
    %v123 = vpop.permute.xlu0 %122
    %vm125 = vcmask 130048
    %v126 = vsel %vm125, %v119, %v123
    %v127 = vpack.c.bf16 %v126, %v126
    %v129 = vlaneseq
    %v130 = vshrl.u32 %v129, 7
    %v131 = vsub.s32 0, %v130
    %v132 = vrot.slane %v107, %v131
    %v140 = vunpack.c.l.b16 %v93
    %v141 = vunpack.c.l.b16 %v94
    %v142 = vunpack.c.l.b16 %v95
    %v143 = vunpack.c.l.b16 %v96
    %v144 = vunpack.c.l.b16 %v97
    %v145 = vunpack.c.l.b16 %v98
    %v146 = vpack.c.b16 %v141, %v140
    %v147 = vpack.c.b16 %v143, %v142
    %v148 = vpack.c.b16 %v145, %v144
    %vm152 = vcmask 392192
    %v154 = vsel %vm152, %v127, 0
    %156 = vmatprep.subr.bf16.mxu0 0
    %157 = vmatpush1.bf16.msra.mxu0 %v146
    %158 = vmatprep.subr.bf16.mxu0 0
    %159 = vmatpush1.bf16.msra.mxu0 %v147
    %160 = vmatprep.subr.bf16.mxu0 0
    %161 = vmatpush1.bf16.msra.mxu0 %v148
    %162 = vmatprep.subr.bf16.mxu0 0
    %163 = vmatpush1.bf16.msra.mxu0 0
    %164 = vmatprep.subr.bf16.mxu0 0
    %165 = vmatpush1.bf16.msra.mxu0 0
    %166 = vmatprep.subr.bf16.mxu0 0
    %167 = vmatpush1.bf16.msra.mxu0 0
    %168 = vmatprep.subr.bf16.mxu0 0
    %169 = vmatpush1.bf16.msra.mxu0 0
    %170 = vmatprep.subr.bf16.mxu0 0
    %171 = vmatpush1.bf16.msra.mxu0 0
    %172 = vmatprep.subr.bf16.mxu0 0
    %173 = vmatpush1.bf16.msra.mxu0 0
    %174 = vmatprep.subr.bf16.mxu0 0
    %175 = vmatpush1.bf16.msra.mxu0 0
    %176 = vmatprep.subr.bf16.mxu0 0
    %177 = vmatpush1.bf16.msra.mxu0 0
    %178 = vmatprep.subr.bf16.mxu0 0
    %179 = vmatpush1.bf16.msra.mxu0 0
    %180 = vmatprep.subr.bf16.mxu0 0
    %181 = vmatpush1.bf16.msra.mxu0 0
    %182 = vmatprep.subr.bf16.mxu0 0
    %183 = vmatpush1.bf16.msra.mxu0 0
    %184 = vmatprep.subr.bf16.mxu0 0
    %185 = vmatpush1.bf16.msra.mxu0 0
    %186 = vmatprep.subr.bf16.mxu0 0
    %187 = vmatpush1.bf16.msra.mxu0 0
    %188 = vmatprep.mubr.bf16.mxu0 0
    %189 = vmatmul.mubr.bf16.gmra.mrb[0].mxu0 %v154
    %v190 = vpop.f32.mrb[0].mxu0
    %v191 = vadd.f32 %v132, %v190
    %v192 = vpop.f32.mrb[0].mxu0
    %v193 = vpop.f32.mrb[0].mxu0
    %v194 = vpop.f32.mrb[0].mxu0
    %195 = vdwg.mxu0
    %v196 = vxor.u32 %v191, 2147483648
    %v197 = vmul.f32 %v196, 1.442695
    %v198 = vpow.pop %v197
    %v199 = vadd.f32 %v198, 1.0
    %v200 = vrcp.pop %v199
    %v201 = vmul.f32 1.0, %v200
    %v202 = vtanh.pop %v191
    %204 = vrot.lane.b32.xlu0 %v112, 32
    %v205 = vpop.permute.xlu0 %204
    %v207 = vmul.f32 %v201, %v205
    %209 = vrot.lane.b32.xlu0 %v202, 64
    %v210 = vpop.permute.xlu0 %209
    %v212 = vmul.f32 %v201, %v210
    %214 = vrot.lane.b32.xlu0 %v212, 32
    %v215 = vpop.permute.xlu0 %214
    %v217 = vadd.f32 %v207, %v215
    %v218 = vtanh.pop %v217
    %220 = vrot.lane.b32.xlu0 %v218, 64
    %v221 = vpop.permute.xlu0 %220
    %v223 = vmul.f32 %v201, %v221
    %vm224 = vcmask 1042434
    %v225 = vsel %vm224, %v117, %v91
    %v228 = vrot.slane %v223, 7
    %229 = vrot.lane.b32.xlu0 %v228, 48
    %v230 = vpop.permute.xlu0 %229
    %v232 = vsel %vm125, %v225, %v230
    %v233 = vpack.c.bf16 %v232, %v232
    %v235 = vshrl.u32 %v233, 16
    %v237 = vshll.u32 %v233, 16
    %v239 = vrot.slane %v237, 1
    %v240 = vor.u32 %v235, %v239
    %v242 = vsel %vm152, %v240, 0
    %244 = vmatprep.subr.bf16.mxu0 0
    %245 = vmatpush1.bf16.msra.mxu0 %v146
    %246 = vmatprep.subr.bf16.mxu0 0
    %247 = vmatpush1.bf16.msra.mxu0 %v147
    %248 = vmatprep.subr.bf16.mxu0 0
    %249 = vmatpush1.bf16.msra.mxu0 %v148
    %250 = vmatprep.subr.bf16.mxu0 0
    %251 = vmatpush1.bf16.msra.mxu0 0
    %252 = vmatprep.subr.bf16.mxu0 0
    %253 = vmatpush1.bf16.msra.mxu0 0
    %254 = vmatprep.subr.bf16.mxu0 0
    %255 = vmatpush1.bf16.msra.mxu0 0
    %256 = vmatprep.subr.bf16.mxu0 0
    %257 = vmatpush1.bf16.msra.mxu0 0
    %258 = vmatprep.subr.bf16.mxu0 0
    %259 = vmatpush1.bf16.msra.mxu0 0
    %260 = vmatprep.subr.bf16.mxu0 0
    %261 = vmatpush1.bf16.msra.mxu0 0
    %262 = vmatprep.subr.bf16.mxu0 0
    %263 = vmatpush1.bf16.msra.mxu0 0
    %264 = vmatprep.subr.bf16.mxu0 0
    %265 = vmatpush1.bf16.msra.mxu0 0
    %266 = vmatprep.subr.bf16.mxu0 0
    %267 = vmatpush1.bf16.msra.mxu0 0
    %268 = vmatprep.subr.bf16.mxu0 0
    %269 = vmatpush1.bf16.msra.mxu0 0
    %270 = vmatprep.subr.bf16.mxu0 0
    %271 = vmatpush1.bf16.msra.mxu0 0
    %272 = vmatprep.subr.bf16.mxu0 0
    %273 = vmatpush1.bf16.msra.mxu0 0
    %274 = vmatprep.subr.bf16.mxu0 0
    %275 = vmatpush1.bf16.msra.mxu0 0
    %276 = vmatprep.mubr.bf16.mxu0 0
    %277 = vmatmul.mubr.bf16.gmra.mrb[0].mxu0 %v242
    %v278 = vpop.f32.mrb[0].mxu0
    %v279 = vadd.f32 %v132, %v278
    %v280 = vpop.f32.mrb[0].mxu0
    %v281 = vpop.f32.mrb[0].mxu0
    %v282 = vpop.f32.mrb[0].mxu0
    %283 = vdwg.mxu0
    %v284 = vxor.u32 %v279, 2147483648
    %v285 = vmul.f32 %v284, 1.442695
    %v286 = vpow.pop %v285
    %v287 = vadd.f32 %v286, 1.0
    %v288 = vrcp.pop %v287
    %v289 = vmul.f32 1.0, %v288
    %v290 = vtanh.pop %v279
    %v291 = vmul.f32 %v289, %v217
    %293 = vrot.lane.b32.xlu0 %v290, 64
    %v294 = vpop.permute.xlu0 %293
    %v296 = vmul.f32 %v289, %v294
    %298 = vrot.lane.b32.xlu0 %v296, 32
    %v299 = vpop.permute.xlu0 %298
    %v301 = vadd.f32 %v291, %v299
    %v302 = vtanh.pop %v301
    %304 = vrot.lane.b32.xlu0 %v302, 64
    %v305 = vpop.permute.xlu0 %304
    %v307 = vmul.f32 %v289, %v305
    %308 = vrot.lane.b32.xlu0 %v223, 32
    %v309 = vpop.permute.xlu0 %308
    %312 = vrot.lane.b32.xlu0 %v111, 32
    %v313 = vpop.permute.xlu0 %312
    %vm315 = vcmask 261120
    %v316 = vsel %vm315, %v309, %v313
    %v317 = vpack.c.bf16 %v316, %v316
    %v319 = vlaneseq
    %v320 = vshrl.u32 %v319, 7
    %v321 = vsub.s32 0, %v320
    %v322 = vrot.slane %v108, %v321
    %v332 = vunpack.c.l.b16 %v99
    %v333 = vunpack.c.l.b16 %v100
    %v334 = vunpack.c.l.b16 %v101
    %v335 = vunpack.c.l.b16 %v102
    %v336 = vunpack.c.l.b16 %v103
    %v337 = vunpack.c.l.b16 %v104
    %v338 = vunpack.c.l.b16 %v105
    %v339 = vunpack.c.l.b16 %v106
    %v340 = vpack.c.b16 %v333, %v332
    %v341 = vpack.c.b16 %v335, %v334
    %v342 = vpack.c.b16 %v337, %v336
    %v343 = vpack.c.b16 %v339, %v338
    %vm348 = vcmask 523264
    %v350 = vsel %vm348, %v317, 0
    %352 = vmatprep.subr.bf16.mxu0 0
    %353 = vmatpush1.bf16.msra.mxu0 %v340
    %354 = vmatprep.subr.bf16.mxu0 0
    %355 = vmatpush1.bf16.msra.mxu0 %v341
    %356 = vmatprep.subr.bf16.mxu0 0
    %357 = vmatpush1.bf16.msra.mxu0 %v342
    %358 = vmatprep.subr.bf16.mxu0 0
    %359 = vmatpush1.bf16.msra.mxu0 %v343
    %360 = vmatprep.subr.bf16.mxu0 0
    %361 = vmatpush1.bf16.msra.mxu0 0
    %362 = vmatprep.subr.bf16.mxu0 0
    %363 = vmatpush1.bf16.msra.mxu0 0
    %364 = vmatprep.subr.bf16.mxu0 0
    %365 = vmatpush1.bf16.msra.mxu0 0
    %366 = vmatprep.subr.bf16.mxu0 0
    %367 = vmatpush1.bf16.msra.mxu0 0
    %368 = vmatprep.subr.bf16.mxu0 0
    %369 = vmatpush1.bf16.msra.mxu0 0
    %370 = vmatprep.subr.bf16.mxu0 0
    %371 = vmatpush1.bf16.msra.mxu0 0
    %372 = vmatprep.subr.bf16.mxu0 0
    %373 = vmatpush1.bf16.msra.mxu0 0
    %374 = vmatprep.subr.bf16.mxu0 0
    %375 = vmatpush1.bf16.msra.mxu0 0
    %376 = vmatprep.subr.bf16.mxu0 0
    %377 = vmatpush1.bf16.msra.mxu0 0
    %378 = vmatprep.subr.bf16.mxu0 0
    %379 = vmatpush1.bf16.msra.mxu0 0
    %380 = vmatprep.subr.bf16.mxu0 0
    %381 = vmatpush1.bf16.msra.mxu0 0
    %382 = vmatprep.subr.bf16.mxu0 0
    %383 = vmatpush1.bf16.msra.mxu0 0
    %384 = vmatprep.mubr.bf16.mxu0 0
    %385 = vmatmul.mubr.bf16.gmra.mrb[0].mxu0 %v350
    %v386 = vpop.f32.mrb[0].mxu0
    %v387 = vadd.f32 %v322, %v386
    %v388 = vpop.f32.mrb[0].mxu0
    %v389 = vpop.f32.mrb[0].mxu0
    %v390 = vpop.f32.mrb[0].mxu0
    %391 = vdwg.mxu0
    %v392 = vxor.u32 %v387, 2147483648
    %v393 = vmul.f32 %v392, 1.442695
    %v394 = vpow.pop %v393
    %v395 = vadd.f32 %v394, 1.0
    %v396 = vrcp.pop %v395
    %v397 = vmul.f32 1.0, %v396
    %v398 = vtanh.pop %v387
    %400 = vrot.lane.b32.xlu0 %v114, 32
    %v401 = vpop.permute.xlu0 %400
    %v403 = vmul.f32 %v397, %v401
    %405 = vrot.lane.b32.xlu0 %v398, 64
    %v406 = vpop.permute.xlu0 %405
    %v408 = vmul.f32 %v397, %v406
    %410 = vrot.lane.b32.xlu0 %v408, 32
    %v411 = vpop.permute.xlu0 %410
    %v413 = vadd.f32 %v403, %v411
    %v414 = vtanh.pop %v413
    %416 = vrot.lane.b32.xlu0 %v414, 64
    %v417 = vpop.permute.xlu0 %416
    %v419 = vmul.f32 %v397, %v417
    %vm420 = vcmask 1043459
    %v421 = vsel %vm420, %v117, %v91
    %v424 = vrot.slane %v307, 6
    %425 = vrot.lane.b32.xlu0 %v424, 48
    %v426 = vpop.permute.xlu0 %425
    %v428 = vsel %vm125, %v421, %v426
    %v429 = vpack.c.bf16 %v428, %v428
    %v431 = vrot.slane %v429, 1
    %v433 = vsel %vm152, %v431, 0
    %435 = vmatprep.subr.bf16.mxu0 0
    %436 = vmatpush1.bf16.msra.mxu0 %v146
    %437 = vmatprep.subr.bf16.mxu0 0
    %438 = vmatpush1.bf16.msra.mxu0 %v147
    %439 = vmatprep.subr.bf16.mxu0 0
    %440 = vmatpush1.bf16.msra.mxu0 %v148
    %441 = vmatprep.subr.bf16.mxu0 0
    %442 = vmatpush1.bf16.msra.mxu0 0
    %443 = vmatprep.subr.bf16.mxu0 0
    %444 = vmatpush1.bf16.msra.mxu0 0
    %445 = vmatprep.subr.bf16.mxu0 0
    %446 = vmatpush1.bf16.msra.mxu0 0
    %447 = vmatprep.subr.bf16.mxu0 0
    %448 = vmatpush1.bf16.msra.mxu0 0
    %449 = vmatprep.subr.bf16.mxu0 0
    %450 = vmatpush1.bf16.msra.mxu0 0
    %451 = vmatprep.subr.bf16.mxu0 0
    %452 = vmatpush1.bf16.msra.mxu0 0
    %453 = vmatprep.subr.bf16.mxu0 0
    %454 = vmatpush1.bf16.msra.mxu0 0
    %455 = vmatprep.subr.bf16.mxu0 0
    %456 = vmatpush1.bf16.msra.mxu0 0
    %457 = vmatprep.subr.bf16.mxu0 0
    %458 = vmatpush1.bf16.msra.mxu0 0
    %459 = vmatprep.subr.bf16.mxu0 0
    %460 = vmatpush1.bf16.msra.mxu0 0
    %461 = vmatprep.subr.bf16.mxu0 0
    %462 = vmatpush1.bf16.msra.mxu0 0
    %463 = vmatprep.subr.bf16.mxu0 0
    %464 = vmatpush1.bf16.msra.mxu0 0
    %465 = vmatprep.subr.bf16.mxu0 0
    %466 = vmatpush1.bf16.msra.mxu0 0
    %467 = vmatprep.mubr.bf16.mxu0 0
    %468 = vmatmul.mubr.bf16.gmra.mrb[0].mxu0 %v433
    %v469 = vpop.f32.mrb[0].mxu0
    %v470 = vadd.f32 %v132, %v469
    %v471 = vpop.f32.mrb[0].mxu0
    %v472 = vpop.f32.mrb[0].mxu0
    %v473 = vpop.f32.mrb[0].mxu0
    %474 = vdwg.mxu0
    %v475 = vxor.u32 %v470, 2147483648
    %v476 = vmul.f32 %v475, 1.442695
    %v477 = vpow.pop %v476
    %v478 = vadd.f32 %v477, 1.0
    %v479 = vrcp.pop %v478
    %v480 = vmul.f32 1.0, %v479
    %v481 = vtanh.pop %v470
    %v482 = vmul.f32 %v480, %v301
    %484 = vrot.lane.b32.xlu0 %v481, 64
    %v485 = vpop.permute.xlu0 %484
    %v487 = vmul.f32 %v480, %v485
    %489 = vrot.lane.b32.xlu0 %v487, 32
    %v490 = vpop.permute.xlu0 %489
    %v492 = vadd.f32 %v482, %v490
    %v493 = vtanh.pop %v492
    %495 = vrot.lane.b32.xlu0 %v493, 64
    %v496 = vpop.permute.xlu0 %495
    %v498 = vmul.f32 %v480, %v496
    %499 = vrot.lane.b32.xlu0 %v307, 32
    %v500 = vpop.permute.xlu0 %499
    %503 = vrot.lane.b32.xlu0 %v419, 64
    %v504 = vpop.permute.xlu0 %503
    %v506 = vsel %vm315, %v500, %v504
    %v507 = vpack.c.bf16 %v506, %v506
    %v509 = vsel %vm348, %v507, 0
    %511 = vmatprep.subr.bf16.mxu0 0
    %512 = vmatpush1.bf16.msra.mxu0 %v340
    %513 = vmatprep.subr.bf16.mxu0 0
    %514 = vmatpush1.bf16.msra.mxu0 %v341
    %515 = vmatprep.subr.bf16.mxu0 0
    %516 = vmatpush1.bf16.msra.mxu0 %v342
    %517 = vmatprep.subr.bf16.mxu0 0
    %518 = vmatpush1.bf16.msra.mxu0 %v343
    %519 = vmatprep.subr.bf16.mxu0 0
    %520 = vmatpush1.bf16.msra.mxu0 0
    %521 = vmatprep.subr.bf16.mxu0 0
    %522 = vmatpush1.bf16.msra.mxu0 0
    %523 = vmatprep.subr.bf16.mxu0 0
    %524 = vmatpush1.bf16.msra.mxu0 0
    %525 = vmatprep.subr.bf16.mxu0 0
    %526 = vmatpush1.bf16.msra.mxu0 0
    %527 = vmatprep.subr.bf16.mxu0 0
    %528 = vmatpush1.bf16.msra.mxu0 0
    %529 = vmatprep.subr.bf16.mxu0 0
    %530 = vmatpush1.bf16.msra.mxu0 0
    %531 = vmatprep.subr.bf16.mxu0 0
    %532 = vmatpush1.bf16.msra.mxu0 0
    %533 = vmatprep.subr.bf16.mxu0 0
    %534 = vmatpush1.bf16.msra.mxu0 0
    %535 = vmatprep.subr.bf16.mxu0 0
    %536 = vmatpush1.bf16.msra.mxu0 0
    %537 = vmatprep.subr.bf16.mxu0 0
    %538 = vmatpush1.bf16.msra.mxu0 0
    %539 = vmatprep.subr.bf16.mxu0 0
    %540 = vmatpush1.bf16.msra.mxu0 0
    %541 = vmatprep.subr.bf16.mxu0 0
    %542 = vmatpush1.bf16.msra.mxu0 0
    %543 = vmatprep.mubr.bf16.mxu0 0
    %544 = vmatmul.mubr.bf16.gmra.mrb[0].mxu0 %v509
    %v545 = vpop.f32.mrb[0].mxu0
    %v546 = vadd.f32 %v322, %v545
    %v547 = vpop.f32.mrb[0].mxu0
    %v548 = vpop.f32.mrb[0].mxu0
    %v549 = vpop.f32.mrb[0].mxu0
    %550 = vdwg.mxu0
    %v551 = vxor.u32 %v546, 2147483648
    %v552 = vmul.f32 %v551, 1.442695
    %v553 = vpow.pop %v552
    %v554 = vadd.f32 %v553, 1.0
    %v555 = vrcp.pop %v554
    %v556 = vmul.f32 1.0, %v555
    %v557 = vtanh.pop %v546
    %v558 = vmul.f32 %v556, %v413
    %560 = vrot.lane.b32.xlu0 %v557, 64
    %v561 = vpop.permute.xlu0 %560
    %v563 = vmul.f32 %v556, %v561
    %565 = vrot.lane.b32.xlu0 %v563, 32
    %v566 = vpop.permute.xlu0 %565
    %v568 = vadd.f32 %v558, %v566
    %v569 = vtanh.pop %v568
    %571 = vrot.lane.b32.xlu0 %v569, 64
    %v572 = vpop.permute.xlu0 %571
    %v574 = vmul.f32 %v556, %v572
    %vm575 = vcmask 1044484
    %v576 = vsel %vm575, %v117, %v91
    %v579 = vrot.slane %v498, 5
    %580 = vrot.lane.b32.xlu0 %v579, 48
    %v581 = vpop.permute.xlu0 %580
    %v583 = vsel %vm125, %v576, %v581
    %v584 = vpack.c.bf16 %v583, %v583
    %v586 = vshrl.u32 %v584, 16
    %v588 = vrot.slane %v586, 1
    %v589 = vshll.u32 %v584, 16
    %v591 = vrot.slane %v589, 2
    %v592 = vor.u32 %v588, %v591
    %v594 = vsel %vm152, %v592, 0
    %596 = vmatprep.subr.bf16.mxu0 0
    %597 = vmatpush1.bf16.msra.mxu0 %v146
    %598 = vmatprep.subr.bf16.mxu0 0
    %599 = vmatpush1.bf16.msra.mxu0 %v147
    %600 = vmatprep.subr.bf16.mxu0 0
    %601 = vmatpush1.bf16.msra.mxu0 %v148
    %602 = vmatprep.subr.bf16.mxu0 0
    %603 = vmatpush1.bf16.msra.mxu0 0
    %604 = vmatprep.subr.bf16.mxu0 0
    %605 = vmatpush1.bf16.msra.mxu0 0
    %606 = vmatprep.subr.bf16.mxu0 0
    %607 = vmatpush1.bf16.msra.mxu0 0
    %608 = vmatprep.subr.bf16.mxu0 0
    %609 = vmatpush1.bf16.msra.mxu0 0
    %610 = vmatprep.subr.bf16.mxu0 0
    %611 = vmatpush1.bf16.msra.mxu0 0
    %612 = vmatprep.subr.bf16.mxu0 0
    %613 = vmatpush1.bf16.msra.mxu0 0
    %614 = vmatprep.subr.bf16.mxu0 0
    %615 = vmatpush1.bf16.msra.mxu0 0
    %616 = vmatprep.subr.bf16.mxu0 0
    %617 = vmatpush1.bf16.msra.mxu0 0
    %618 = vmatprep.subr.bf16.mxu0 0
    %619 = vmatpush1.bf16.msra.mxu0 0
    %620 = vmatprep.subr.bf16.mxu0 0
    %621 = vmatpush1.bf16.msra.mxu0 0
    %622 = vmatprep.subr.bf16.mxu0 0
    %623 = vmatpush1.bf16.msra.mxu0 0
    %624 = vmatprep.subr.bf16.mxu0 0
    %625 = vmatpush1.bf16.msra.mxu0 0
    %626 = vmatprep.subr.bf16.mxu0 0
    %627 = vmatpush1.bf16.msra.mxu0 0
    %628 = vmatprep.mubr.bf16.mxu0 0
    %629 = vmatmul.mubr.bf16.gmra.mrb[0].mxu0 %v594
    %v630 = vpop.f32.mrb[0].mxu0
    %v631 = vadd.f32 %v132, %v630
    %v632 = vpop.f32.mrb[0].mxu0
    %v633 = vpop.f32.mrb[0].mxu0
    %v634 = vpop.f32.mrb[0].mxu0
    %635 = vdwg.mxu0
    %v636 = vxor.u32 %v631, 2147483648
    %v637 = vmul.f32 %v636, 1.442695
    %v638 = vpow.pop %v637
    %v639 = vadd.f32 %v638, 1.0
    %v640 = vrcp.pop %v639
    %v641 = vmul.f32 1.0, %v640
    %v642 = vtanh.pop %v631
    %v643 = vmul.f32 %v641, %v492
    %645 = vrot.lane.b32.xlu0 %v642, 64
    %v646 = vpop.permute.xlu0 %645
    %v648 = vmul.f32 %v641, %v646
    %650 = vrot.lane.b32.xlu0 %v648, 32
    %v651 = vpop.permute.xlu0 %650
    %v653 = vadd.f32 %v643, %v651
    %v654 = vtanh.pop %v653
    %656 = vrot.lane.b32.xlu0 %v654, 64
    %v657 = vpop.permute.xlu0 %656
    %v659 = vmul.f32 %v641, %v657
    %660 = vrot.lane.b32.xlu0 %v498, 32
    %v661 = vpop.permute.xlu0 %660
    %664 = vrot.lane.b32.xlu0 %v574, 64
    %v665 = vpop.permute.xlu0 %664
    %v667 = vsel %vm315, %v661, %v665
    %v668 = vpack.c.bf16 %v667, %v667
    %v670 = vsel %vm348, %v668, 0
    %672 = vmatprep.subr.bf16.mxu0 0
    %673 = vmatpush1.bf16.msra.mxu0 %v340
    %674 = vmatprep.subr.bf16.mxu0 0
    %675 = vmatpush1.bf16.msra.mxu0 %v341
    %676 = vmatprep.subr.bf16.mxu0 0
    %677 = vmatpush1.bf16.msra.mxu0 %v342
    %678 = vmatprep.subr.bf16.mxu0 0
    %679 = vmatpush1.bf16.msra.mxu0 %v343
    %680 = vmatprep.subr.bf16.mxu0 0
    %681 = vmatpush1.bf16.msra.mxu0 0
    %682 = vmatprep.subr.bf16.mxu0 0
    %683 = vmatpush1.bf16.msra.mxu0 0
    %684 = vmatprep.subr.bf16.mxu0 0
    %685 = vmatpush1.bf16.msra.mxu0 0
    %686 = vmatprep.subr.bf16.mxu0 0
    %687 = vmatpush1.bf16.msra.mxu0 0
    %688 = vmatprep.subr.bf16.mxu0 0
    %689 = vmatpush1.bf16.msra.mxu0 0
    %690 = vmatprep.subr.bf16.mxu0 0
    %691 = vmatpush1.bf16.msra.mxu0 0
    %692 = vmatprep.subr.bf16.mxu0 0
    %693 = vmatpush1.bf16.msra.mxu0 0
    %694 = vmatprep.subr.bf16.mxu0 0
    %695 = vmatpush1.bf16.msra.mxu0 0
    %696 = vmatprep.subr.bf16.mxu0 0
    %697 = vmatpush1.bf16.msra.mxu0 0
    %698 = vmatprep.subr.bf16.mxu0 0
    %699 = vmatpush1.bf16.msra.mxu0 0
    %700 = vmatprep.subr.bf16.mxu0 0
    %701 = vmatpush1.bf16.msra.mxu0 0
    %702 = vmatprep.subr.bf16.mxu0 0
    %703 = vmatpush1.bf16.msra.mxu0 0
    %704 = vmatprep.mubr.bf16.mxu0 0
    %705 = vmatmul.mubr.bf16.gmra.mrb[0].mxu0 %v670
    %v706 = vpop.f32.mrb[0].mxu0
    %v707 = vadd.f32 %v322, %v706
    %v708 = vpop.f32.mrb[0].mxu0
    %v709 = vpop.f32.mrb[0].mxu0
    %v710 = vpop.f32.mrb[0].mxu0
    %711 = vdwg.mxu0
    %v712 = vxor.u32 %v707, 2147483648
    %v713 = vmul.f32 %v712, 1.442695
    %v714 = vpow.pop %v713
    %v715 = vadd.f32 %v714, 1.0
    %v716 = vrcp.pop %v715
    %v717 = vmul.f32 1.0, %v716
    %v718 = vtanh.pop %v707
    %v719 = vmul.f32 %v717, %v568
    %721 = vrot.lane.b32.xlu0 %v718, 64
    %v722 = vpop.permute.xlu0 %721
    %v724 = vmul.f32 %v717, %v722
    %726 = vrot.lane.b32.xlu0 %v724, 32
    %v727 = vpop.permute.xlu0 %726
    %v729 = vadd.f32 %v719, %v727
    %v730 = vtanh.pop %v729
    %732 = vrot.lane.b32.xlu0 %v730, 64
    %v733 = vpop.permute.xlu0 %732
    %v735 = vmul.f32 %v717, %v733
    %vm736 = vcmask 1045509
    %v737 = vsel %vm736, %v117, %v91
    %v740 = vrot.slane %v659, 4
    %741 = vrot.lane.b32.xlu0 %v740, 48
    %v742 = vpop.permute.xlu0 %741
    %v744 = vsel %vm125, %v737, %v742
    %v745 = vpack.c.bf16 %v744, %v744
    %v747 = vrot.slane %v745, 2
    %v749 = vsel %vm152, %v747, 0
    %751 = vmatprep.subr.bf16.mxu0 0
    %752 = vmatpush1.bf16.msra.mxu0 %v146
    %753 = vmatprep.subr.bf16.mxu0 0
    %754 = vmatpush1.bf16.msra.mxu0 %v147
    %755 = vmatprep.subr.bf16.mxu0 0
    %756 = vmatpush1.bf16.msra.mxu0 %v148
    %757 = vmatprep.subr.bf16.mxu0 0
    %758 = vmatpush1.bf16.msra.mxu0 0
    %759 = vmatprep.subr.bf16.mxu0 0
    %760 = vmatpush1.bf16.msra.mxu0 0
    %761 = vmatprep.subr.bf16.mxu0 0
    %762 = vmatpush1.bf16.msra.mxu0 0
    %763 = vmatprep.subr.bf16.mxu0 0
    %764 = vmatpush1.bf16.msra.mxu0 0
    %765 = vmatprep.subr.bf16.mxu0 0
    %766 = vmatpush1.bf16.msra.mxu0 0
    %767 = vmatprep.subr.bf16.mxu0 0
    %768 = vmatpush1.bf16.msra.mxu0 0
    %769 = vmatprep.subr.bf16.mxu0 0
    %770 = vmatpush1.bf16.msra.mxu0 0
    %771 = vmatprep.subr.bf16.mxu0 0
    %772 = vmatpush1.bf16.msra.mxu0 0
    %773 = vmatprep.subr.bf16.mxu0 0
    %774 = vmatpush1.bf16.msra.mxu0 0
    %775 = vmatprep.subr.bf16.mxu0 0
    %776 = vmatpush1.bf16.msra.mxu0 0
    %777 = vmatprep.subr.bf16.mxu0 0
    %778 = vmatpush1.bf16.msra.mxu0 0
    %779 = vmatprep.subr.bf16.mxu0 0
    %780 = vmatpush1.bf16.msra.mxu0 0
    %781 = vmatprep.subr.bf16.mxu0 0
    %782 = vmatpush1.bf16.msra.mxu0 0
    %783 = vmatprep.mubr.bf16.mxu0 0
    %784 = vmatmul.mubr.bf16.gmra.mrb[0].mxu0 %v749
    %v785 = vpop.f32.mrb[0].mxu0
    %v786 = vadd.f32 %v132, %v785
    %v787 = vpop.f32.mrb[0].mxu0
    %v788 = vpop.f32.mrb[0].mxu0
    %v789 = vpop.f32.mrb[0].mxu0
    %790 = vdwg.mxu0
    %v791 = vxor.u32 %v786, 2147483648
    %v792 = vmul.f32 %v791, 1.442695
    %v793 = vpow.pop %v792
    %v794 = vadd.f32 %v793, 1.0
    %v795 = vrcp.pop %v794
    %v796 = vmul.f32 1.0, %v795
    %v797 = vtanh.pop %v786
    %v798 = vmul.f32 %v796, %v653
    %800 = vrot.lane.b32.xlu0 %v797, 64
    %v801 = vpop.permute.xlu0 %800
    %v803 = vmul.f32 %v796, %v801
    %805 = vrot.lane.b32.xlu0 %v803, 32
    %v806 = vpop.permute.xlu0 %805
    %v808 = vadd.f32 %v798, %v806
    %v809 = vtanh.pop %v808
    %811 = vrot.lane.b32.xlu0 %v809, 64
    %v812 = vpop.permute.xlu0 %811
    %v814 = vmul.f32 %v796, %v812
    %815 = vrot.lane.b32.xlu0 %v659, 32
    %v816 = vpop.permute.xlu0 %815
    %819 = vrot.lane.b32.xlu0 %v735, 64
    %v820 = vpop.permute.xlu0 %819
    %v822 = vsel %vm315, %v816, %v820
    %v823 = vpack.c.bf16 %v822, %v822
    %v825 = vsel %vm348, %v823, 0
    %827 = vmatprep.subr.bf16.mxu0 0
    %828 = vmatpush1.bf16.msra.mxu0 %v340
    %829 = vmatprep.subr.bf16.mxu0 0
    %830 = vmatpush1.bf16.msra.mxu0 %v341
    %831 = vmatprep.subr.bf16.mxu0 0
    %832 = vmatpush1.bf16.msra.mxu0 %v342
    %833 = vmatprep.subr.bf16.mxu0 0
    %834 = vmatpush1.bf16.msra.mxu0 %v343
    %835 = vmatprep.subr.bf16.mxu0 0
    %836 = vmatpush1.bf16.msra.mxu0 0
    %837 = vmatprep.subr.bf16.mxu0 0
    %838 = vmatpush1.bf16.msra.mxu0 0
    %839 = vmatprep.subr.bf16.mxu0 0
    %840 = vmatpush1.bf16.msra.mxu0 0
    %841 = vmatprep.subr.bf16.mxu0 0
    %842 = vmatpush1.bf16.msra.mxu0 0
    %843 = vmatprep.subr.bf16.mxu0 0
    %844 = vmatpush1.bf16.msra.mxu0 0
    %845 = vmatprep.subr.bf16.mxu0 0
    %846 = vmatpush1.bf16.msra.mxu0 0
    %847 = vmatprep.subr.bf16.mxu0 0
    %848 = vmatpush1.bf16.msra.mxu0 0
    %849 = vmatprep.subr.bf16.mxu0 0
    %850 = vmatpush1.bf16.msra.mxu0 0
    %851 = vmatprep.subr.bf16.mxu0 0
    %852 = vmatpush1.bf16.msra.mxu0 0
    %853 = vmatprep.subr.bf16.mxu0 0
    %854 = vmatpush1.bf16.msra.mxu0 0
    %855 = vmatprep.subr.bf16.mxu0 0
    %856 = vmatpush1.bf16.msra.mxu0 0
    %857 = vmatprep.subr.bf16.mxu0 0
    %858 = vmatpush1.bf16.msra.mxu0 0
    %859 = vmatprep.mubr.bf16.mxu0 0
    %860 = vmatmul.mubr.bf16.gmra.mrb[0].mxu0 %v825
    %v861 = vpop.f32.mrb[0].mxu0
    %v862 = vadd.f32 %v322, %v861
    %v863 = vpop.f32.mrb[0].mxu0
    %v864 = vpop.f32.mrb[0].mxu0
    %v865 = vpop.f32.mrb[0].mxu0
    %866 = vdwg.mxu0
    %v867 = vxor.u32 %v862, 2147483648
    %v868 = vmul.f32 %v867, 1.442695
    %v869 = vpow.pop %v868
    %v870 = vadd.f32 %v869, 1.0
    %v871 = vrcp.pop %v870
    %v872 = vmul.f32 1.0, %v871
    %v873 = vtanh.pop %v862
    %v874 = vmul.f32 %v872, %v729
    %876 = vrot.lane.b32.xlu0 %v873, 64
    %v877 = vpop.permute.xlu0 %876
    %v879 = vmul.f32 %v872, %v877
    %881 = vrot.lane.b32.xlu0 %v879, 32
    %v882 = vpop.permute.xlu0 %881
    %v884 = vadd.f32 %v874, %v882
    %v885 = vtanh.pop %v884
    %887 = vrot.lane.b32.xlu0 %v885, 64
    %v888 = vpop.permute.xlu0 %887
    %v890 = vmul.f32 %v872, %v888
    %vm891 = vcmask 1046534
    %v892 = vsel %vm891, %v117, %v91
    %v895 = vrot.slane %v814, 3
    %896 = vrot.lane.b32.xlu0 %v895, 48
    %v897 = vpop.permute.xlu0 %896
    %v899 = vsel %vm125, %v892, %v897
    %v900 = vpack.c.bf16 %v899, %v899
    %v902 = vshrl.u32 %v900, 16
    %v904 = vrot.slane %v902, 2
    %v905 = vshll.u32 %v900, 16
    %v907 = vrot.slane %v905, 3
    %v908 = vor.u32 %v904, %v907
    %v910 = vsel %vm152, %v908, 0
    %912 = vmatprep.subr.bf16.mxu0 0
    %913 = vmatpush1.bf16.msra.mxu0 %v146
    %914 = vmatprep.subr.bf16.mxu0 0
    %915 = vmatpush1.bf16.msra.mxu0 %v147
    %916 = vmatprep.subr.bf16.mxu0 0
    %917 = vmatpush1.bf16.msra.mxu0 %v148
    %918 = vmatprep.subr.bf16.mxu0 0
    %919 = vmatpush1.bf16.msra.mxu0 0
    %920 = vmatprep.subr.bf16.mxu0 0
    %921 = vmatpush1.bf16.msra.mxu0 0
    %922 = vmatprep.subr.bf16.mxu0 0
    %923 = vmatpush1.bf16.msra.mxu0 0
    %924 = vmatprep.subr.bf16.mxu0 0
    %925 = vmatpush1.bf16.msra.mxu0 0
    %926 = vmatprep.subr.bf16.mxu0 0
    %927 = vmatpush1.bf16.msra.mxu0 0
    %928 = vmatprep.subr.bf16.mxu0 0
    %929 = vmatpush1.bf16.msra.mxu0 0
    %930 = vmatprep.subr.bf16.mxu0 0
    %931 = vmatpush1.bf16.msra.mxu0 0
    %932 = vmatprep.subr.bf16.mxu0 0
    %933 = vmatpush1.bf16.msra.mxu0 0
    %934 = vmatprep.subr.bf16.mxu0 0
    %935 = vmatpush1.bf16.msra.mxu0 0
    %936 = vmatprep.subr.bf16.mxu0 0
    %937 = vmatpush1.bf16.msra.mxu0 0
    %938 = vmatprep.subr.bf16.mxu0 0
    %939 = vmatpush1.bf16.msra.mxu0 0
    %940 = vmatprep.subr.bf16.mxu0 0
    %941 = vmatpush1.bf16.msra.mxu0 0
    %942 = vmatprep.subr.bf16.mxu0 0
    %943 = vmatpush1.bf16.msra.mxu0 0
    %944 = vmatprep.mubr.bf16.mxu0 0
    %945 = vmatmul.mubr.bf16.gmra.mrb[0].mxu0 %v910
    %v946 = vpop.f32.mrb[0].mxu0
    %v947 = vadd.f32 %v132, %v946
    %v948 = vpop.f32.mrb[0].mxu0
    %v949 = vpop.f32.mrb[0].mxu0
    %v950 = vpop.f32.mrb[0].mxu0
    %951 = vdwg.mxu0
    %v952 = vxor.u32 %v947, 2147483648
    %v953 = vmul.f32 %v952, 1.442695
    %v954 = vpow.pop %v953
    %v955 = vadd.f32 %v954, 1.0
    %v956 = vrcp.pop %v955
    %v957 = vmul.f32 1.0, %v956
    %v958 = vtanh.pop %v947
    %v959 = vmul.f32 %v957, %v808
    %961 = vrot.lane.b32.xlu0 %v958, 64
    %v962 = vpop.permute.xlu0 %961
    %v964 = vmul.f32 %v957, %v962
    %966 = vrot.lane.b32.xlu0 %v964, 32
    %v967 = vpop.permute.xlu0 %966
    %v969 = vadd.f32 %v959, %v967
    %v970 = vtanh.pop %v969
    %972 = vrot.lane.b32.xlu0 %v970, 64
    %v973 = vpop.permute.xlu0 %972
    %v975 = vmul.f32 %v957, %v973
    %976 = vrot.lane.b32.xlu0 %v814, 32
    %v977 = vpop.permute.xlu0 %976
    %980 = vrot.lane.b32.xlu0 %v890, 64
    %v981 = vpop.permute.xlu0 %980
    %v983 = vsel %vm315, %v977, %v981
    %v984 = vpack.c.bf16 %v983, %v983
    %v986 = vsel %vm348, %v984, 0
    %988 = vmatprep.subr.bf16.mxu0 0
    %989 = vmatpush1.bf16.msra.mxu0 %v340
    %990 = vmatprep.subr.bf16.mxu0 0
    %991 = vmatpush1.bf16.msra.mxu0 %v341
    %992 = vmatprep.subr.bf16.mxu0 0
    %993 = vmatpush1.bf16.msra.mxu0 %v342
    %994 = vmatprep.subr.bf16.mxu0 0
    %995 = vmatpush1.bf16.msra.mxu0 %v343
    %996 = vmatprep.subr.bf16.mxu0 0
    %997 = vmatpush1.bf16.msra.mxu0 0
    %998 = vmatprep.subr.bf16.mxu0 0
    %999 = vmatpush1.bf16.msra.mxu0 0
    %1000 = vmatprep.subr.bf16.mxu0 0
    %1001 = vmatpush1.bf16.msra.mxu0 0
    %1002 = vmatprep.subr.bf16.mxu0 0
    %1003 = vmatpush1.bf16.msra.mxu0 0
    %1004 = vmatprep.subr.bf16.mxu0 0
    %1005 = vmatpush1.bf16.msra.mxu0 0
    %1006 = vmatprep.subr.bf16.mxu0 0
    %1007 = vmatpush1.bf16.msra.mxu0 0
    %1008 = vmatprep.subr.bf16.mxu0 0
    %1009 = vmatpush1.bf16.msra.mxu0 0
    %1010 = vmatprep.subr.bf16.mxu0 0
    %1011 = vmatpush1.bf16.msra.mxu0 0
    %1012 = vmatprep.subr.bf16.mxu0 0
    %1013 = vmatpush1.bf16.msra.mxu0 0
    %1014 = vmatprep.subr.bf16.mxu0 0
    %1015 = vmatpush1.bf16.msra.mxu0 0
    %1016 = vmatprep.subr.bf16.mxu0 0
    %1017 = vmatpush1.bf16.msra.mxu0 0
    %1018 = vmatprep.subr.bf16.mxu0 0
    %1019 = vmatpush1.bf16.msra.mxu0 0
    %1020 = vmatprep.mubr.bf16.mxu0 0
    %1021 = vmatmul.mubr.bf16.gmra.mrb[0].mxu0 %v986
    %v1022 = vpop.f32.mrb[0].mxu0
    %v1023 = vadd.f32 %v322, %v1022
    %v1024 = vpop.f32.mrb[0].mxu0
    %v1025 = vpop.f32.mrb[0].mxu0
    %v1026 = vpop.f32.mrb[0].mxu0
    %1027 = vdwg.mxu0
    %v1028 = vxor.u32 %v1023, 2147483648
    %v1029 = vmul.f32 %v1028, 1.442695
    %v1030 = vpow.pop %v1029
    %v1031 = vadd.f32 %v1030, 1.0
    %v1032 = vrcp.pop %v1031
    %v1033 = vmul.f32 1.0, %v1032
    %v1034 = vtanh.pop %v1023
    %v1035 = vmul.f32 %v1033, %v884
    %1037 = vrot.lane.b32.xlu0 %v1034, 64
    %v1038 = vpop.permute.xlu0 %1037
    %v1040 = vmul.f32 %v1033, %v1038
    %1042 = vrot.lane.b32.xlu0 %v1040, 32
    %v1043 = vpop.permute.xlu0 %1042
    %v1045 = vadd.f32 %v1035, %v1043
    %v1046 = vtanh.pop %v1045
    %1048 = vrot.lane.b32.xlu0 %v1046, 64
    %v1049 = vpop.permute.xlu0 %1048
    %v1051 = vmul.f32 %v1033, %v1049
    %vm1052 = vcmask 1047559
    %v1053 = vsel %vm1052, %v117, %v91
    %v1056 = vrot.slane %v975, 2
    %1057 = vrot.lane.b32.xlu0 %v1056, 48
    %v1058 = vpop.permute.xlu0 %1057
    %v1060 = vsel %vm125, %v1053, %v1058
    %v1061 = vpack.c.bf16 %v1060, %v1060
    %v1063 = vrot.slane %v1061, 3
    %v1065 = vsel %vm152, %v1063, 0
    %1067 = vmatprep.subr.bf16.mxu0 0
    %1068 = vmatpush1.bf16.msra.mxu0 %v146
    %1069 = vmatprep.subr.bf16.mxu0 0
    %1070 = vmatpush1.bf16.msra.mxu0 %v147
    %1071 = vmatprep.subr.bf16.mxu0 0
    %1072 = vmatpush1.bf16.msra.mxu0 %v148
    %1073 = vmatprep.subr.bf16.mxu0 0
    %1074 = vmatpush1.bf16.msra.mxu0 0
    %1075 = vmatprep.subr.bf16.mxu0 0
    %1076 = vmatpush1.bf16.msra.mxu0 0
    %1077 = vmatprep.subr.bf16.mxu0 0
    %1078 = vmatpush1.bf16.msra.mxu0 0
    %1079 = vmatprep.subr.bf16.mxu0 0
    %1080 = vmatpush1.bf16.msra.mxu0 0
    %1081 = vmatprep.subr.bf16.mxu0 0
    %1082 = vmatpush1.bf16.msra.mxu0 0
    %1083 = vmatprep.subr.bf16.mxu0 0
    %1084 = vmatpush1.bf16.msra.mxu0 0
    %1085 = vmatprep.subr.bf16.mxu0 0
    %1086 = vmatpush1.bf16.msra.mxu0 0
    %1087 = vmatprep.subr.bf16.mxu0 0
    %1088 = vmatpush1.bf16.msra.mxu0 0
    %1089 = vmatprep.subr.bf16.mxu0 0
    %1090 = vmatpush1.bf16.msra.mxu0 0
    %1091 = vmatprep.subr.bf16.mxu0 0
    %1092 = vmatpush1.bf16.msra.mxu0 0
    %1093 = vmatprep.subr.bf16.mxu0 0
    %1094 = vmatpush1.bf16.msra.mxu0 0
    %1095 = vmatprep.subr.bf16.mxu0 0
    %1096 = vmatpush1.bf16.msra.mxu0 0
    %1097 = vmatprep.subr.bf16.mxu0 0
    %1098 = vmatpush1.bf16.msra.mxu0 0
    %1099 = vmatprep.mubr.bf16.mxu0 0
    %1100 = vmatmul.mubr.bf16.gmra.mrb[0].mxu0 %v1065
    %v1101 = vpop.f32.mrb[0].mxu0
    %v1102 = vadd.f32 %v132, %v1101
    %v1103 = vpop.f32.mrb[0].mxu0
    %v1104 = vpop.f32.mrb[0].mxu0
    %v1105 = vpop.f32.mrb[0].mxu0
    %1106 = vdwg.mxu0
    %v1107 = vxor.u32 %v1102, 2147483648
    %v1108 = vmul.f32 %v1107, 1.442695
    %v1109 = vpow.pop %v1108
    %v1110 = vadd.f32 %v1109, 1.0
    %v1111 = vrcp.pop %v1110
    %v1112 = vmul.f32 1.0, %v1111
    %v1113 = vtanh.pop %v1102
    %v1114 = vmul.f32 %v1112, %v969
    %1116 = vrot.lane.b32.xlu0 %v1113, 64
    %v1117 = vpop.permute.xlu0 %1116
    %v1119 = vmul.f32 %v1112, %v1117
    %1121 = vrot.lane.b32.xlu0 %v1119, 32
    %v1122 = vpop.permute.xlu0 %1121
    %v1124 = vadd.f32 %v1114, %v1122
    %v1125 = vtanh.pop %v1124
    %1127 = vrot.lane.b32.xlu0 %v1125, 64
    %v1128 = vpop.permute.xlu0 %1127
    %v1130 = vmul.f32 %v1112, %v1128
    %1131 = vrot.lane.b32.xlu0 %v975, 32
    %v1132 = vpop.permute.xlu0 %1131
    %1135 = vrot.lane.b32.xlu0 %v1051, 64
    %v1136 = vpop.permute.xlu0 %1135
    %v1138 = vsel %vm315, %v1132, %v1136
    %v1139 = vpack.c.bf16 %v1138, %v1138
    %v1141 = vsel %vm348, %v1139, 0
    %1143 = vmatprep.subr.bf16.mxu0 0
    %1144 = vmatpush1.bf16.msra.mxu0 %v340
    %1145 = vmatprep.subr.bf16.mxu0 0
    %1146 = vmatpush1.bf16.msra.mxu0 %v341
    %1147 = vmatprep.subr.bf16.mxu0 0
    %1148 = vmatpush1.bf16.msra.mxu0 %v342
    %1149 = vmatprep.subr.bf16.mxu0 0
    %1150 = vmatpush1.bf16.msra.mxu0 %v343
    %1151 = vmatprep.subr.bf16.mxu0 0
    %1152 = vmatpush1.bf16.msra.mxu0 0
    %1153 = vmatprep.subr.bf16.mxu0 0
    %1154 = vmatpush1.bf16.msra.mxu0 0
    %1155 = vmatprep.subr.bf16.mxu0 0
    %1156 = vmatpush1.bf16.msra.mxu0 0
    %1157 = vmatprep.subr.bf16.mxu0 0
    %1158 = vmatpush1.bf16.msra.mxu0 0
    %1159 = vmatprep.subr.bf16.mxu0 0
    %1160 = vmatpush1.bf16.msra.mxu0 0
    %1161 = vmatprep.subr.bf16.mxu0 0
    %1162 = vmatpush1.bf16.msra.mxu0 0
    %1163 = vmatprep.subr.bf16.mxu0 0
    %1164 = vmatpush1.bf16.msra.mxu0 0
    %1165 = vmatprep.subr.bf16.mxu0 0
    %1166 = vmatpush1.bf16.msra.mxu0 0
    %1167 = vmatprep.subr.bf16.mxu0 0
    %1168 = vmatpush1.bf16.msra.mxu0 0
    %1169 = vmatprep.subr.bf16.mxu0 0
    %1170 = vmatpush1.bf16.msra.mxu0 0
    %1171 = vmatprep.subr.bf16.mxu0 0
    %1172 = vmatpush1.bf16.msra.mxu0 0
    %1173 = vmatprep.subr.bf16.mxu0 0
    %1174 = vmatpush1.bf16.msra.mxu0 0
    %1175 = vmatprep.mubr.bf16.mxu0 0
    %1176 = vmatmul.mubr.bf16.gmra.mrb[0].mxu0 %v1141
    %v1177 = vpop.f32.mrb[0].mxu0
    %v1178 = vadd.f32 %v322, %v1177
    %v1179 = vpop.f32.mrb[0].mxu0
    %v1180 = vpop.f32.mrb[0].mxu0
    %v1181 = vpop.f32.mrb[0].mxu0
    %1182 = vdwg.mxu0
    %v1183 = vxor.u32 %v1178, 2147483648
    %v1184 = vmul.f32 %v1183, 1.442695
    %v1185 = vpow.pop %v1184
    %v1186 = vadd.f32 %v1185, 1.0
    %v1187 = vrcp.pop %v1186
    %v1188 = vmul.f32 1.0, %v1187
    %v1189 = vtanh.pop %v1178
    %v1190 = vmul.f32 %v1188, %v1045
    %1192 = vrot.lane.b32.xlu0 %v1189, 64
    %v1193 = vpop.permute.xlu0 %1192
    %v1195 = vmul.f32 %v1188, %v1193
    %1197 = vrot.lane.b32.xlu0 %v1195, 32
    %v1198 = vpop.permute.xlu0 %1197
    %v1200 = vadd.f32 %v1190, %v1198
    %v1201 = vtanh.pop %v1200
    %1203 = vrot.lane.b32.xlu0 %v1201, 64
    %v1204 = vpop.permute.xlu0 %1203
    %v1206 = vmul.f32 %v1188, %v1204
    %v1210 = vrot.slane %v1130, 1
    %1211 = vrot.lane.b32.xlu0 %v1210, 48
    %v1212 = vpop.permute.xlu0 %1211
    %v1214 = vsel %vm125, %v91, %v1212
    %v1215 = vsel %vm125, %v117, %v1212
    %v1216 = vpack.c.bf16 %v1215, %v1214
    %v1218 = vshrl.u32 %v1216, 16
    %v1220 = vrot.slane %v1218, 3
    %v1221 = vshll.u32 %v1216, 16
    %v1223 = vrot.slane %v1221, 4
    %v1224 = vor.u32 %v1220, %v1223
    %v1226 = vsel %vm152, %v1224, 0
    %1228 = vmatprep.subr.bf16.mxu0 0
    %1229 = vmatpush1.bf16.msra.mxu0 %v146
    %1230 = vmatprep.subr.bf16.mxu0 0
    %1231 = vmatpush1.bf16.msra.mxu0 %v147
    %1232 = vmatprep.subr.bf16.mxu0 0
    %1233 = vmatpush1.bf16.msra.mxu0 %v148
    %1234 = vmatprep.subr.bf16.mxu0 0
    %1235 = vmatpush1.bf16.msra.mxu0 0
    %1236 = vmatprep.subr.bf16.mxu0 0
    %1237 = vmatpush1.bf16.msra.mxu0 0
    %1238 = vmatprep.subr.bf16.mxu0 0
    %1239 = vmatpush1.bf16.msra.mxu0 0
    %1240 = vmatprep.subr.bf16.mxu0 0
    %1241 = vmatpush1.bf16.msra.mxu0 0
    %1242 = vmatprep.subr.bf16.mxu0 0
    %1243 = vmatpush1.bf16.msra.mxu0 0
    %1244 = vmatprep.subr.bf16.mxu0 0
    %1245 = vmatpush1.bf16.msra.mxu0 0
    %1246 = vmatprep.subr.bf16.mxu0 0
    %1247 = vmatpush1.bf16.msra.mxu0 0
    %1248 = vmatprep.subr.bf16.mxu0 0
    %1249 = vmatpush1.bf16.msra.mxu0 0
    %1250 = vmatprep.subr.bf16.mxu0 0
    %1251 = vmatpush1.bf16.msra.mxu0 0
    %1252 = vmatprep.subr.bf16.mxu0 0
    %1253 = vmatpush1.bf16.msra.mxu0 0
    %1254 = vmatprep.subr.bf16.mxu0 0
    %1255 = vmatpush1.bf16.msra.mxu0 0
    %1256 = vmatprep.subr.bf16.mxu0 0
    %1257 = vmatpush1.bf16.msra.mxu0 0
    %1258 = vmatprep.subr.bf16.mxu0 0
    %1259 = vmatpush1.bf16.msra.mxu0 0
    %1260 = vmatprep.mubr.bf16.mxu0 0
    %1261 = vmatmul.mubr.bf16.gmra.mrb[0].mxu0 %v1226
    %v1262 = vpop.f32.mrb[0].mxu0
    %v1263 = vadd.f32 %v132, %v1262
    %v1264 = vpop.f32.mrb[0].mxu0
    %v1265 = vpop.f32.mrb[0].mxu0
    %v1266 = vpop.f32.mrb[0].mxu0
    %1267 = vdwg.mxu0
    %v1268 = vxor.u32 %v1263, 2147483648
    %v1269 = vmul.f32 %v1268, 1.442695
    %v1270 = vpow.pop %v1269
    %v1271 = vadd.f32 %v1270, 1.0
    %v1272 = vrcp.pop %v1271
    %v1273 = vmul.f32 1.0, %v1272
    %v1274 = vtanh.pop %v1263
    %v1275 = vmul.f32 %v1273, %v1124
    %1277 = vrot.lane.b32.xlu0 %v1274, 64
    %v1278 = vpop.permute.xlu0 %1277
    %v1280 = vmul.f32 %v1273, %v1278
    %1282 = vrot.lane.b32.xlu0 %v1280, 32
    %v1283 = vpop.permute.xlu0 %1282
    %v1285 = vadd.f32 %v1275, %v1283
    %v1286 = vtanh.pop %v1285
    %1288 = vrot.lane.b32.xlu0 %v1286, 64
    %v1289 = vpop.permute.xlu0 %1288
    %v1291 = vmul.f32 %v1273, %v1289
    %1293 = vrot.lane.b32.xlu0 %v1291, 32
    %v1294 = vpop.permute.xlu0 %1293
    %vm1296 = vcmask 254976
    %1297 = vst.msk [vmem:[#allocation11] sm:$0x3] %vm1296, %v1294
    %1299 = vrot.lane.b32.xlu0 %v1285, 96
    %v1300 = vpop.permute.xlu0 %1299
    %1302 = vst.msk [vmem:[#allocation13] sm:$0x3] %vm1296, %v1300
    %1303 = vrot.lane.b32.xlu0 %v1130, 32
    %v1304 = vpop.permute.xlu0 %1303
    %1307 = vrot.lane.b32.xlu0 %v1206, 64
    %v1308 = vpop.permute.xlu0 %1307
    %v1310 = vsel %vm315, %v1304, %v1308
    %v1311 = vpack.c.bf16 %v1310, %v1310
    %v1313 = vsel %vm348, %v1311, 0
    %1315 = vmatprep.subr.bf16.mxu0 0
    %1316 = vmatpush1.bf16.msra.mxu0 %v340
    %1317 = vmatprep.subr.bf16.mxu0 0
    %1318 = vmatpush1.bf16.msra.mxu0 %v341
    %1319 = vmatprep.subr.bf16.mxu0 0
    %1320 = vmatpush1.bf16.msra.mxu0 %v342
    %1321 = vmatprep.subr.bf16.mxu0 0
    %1322 = vmatpush1.bf16.msra.mxu0 %v343
    %1323 = vmatprep.subr.bf16.mxu0 0
    %1324 = vmatpush1.bf16.msra.mxu0 0
    %1325 = vmatprep.subr.bf16.mxu0 0
    %1326 = vmatpush1.bf16.msra.mxu0 0
    %1327 = vmatprep.subr.bf16.mxu0 0
    %1328 = vmatpush1.bf16.msra.mxu0 0
    %1329 = vmatprep.subr.bf16.mxu0 0
    %1330 = vmatpush1.bf16.msra.mxu0 0
    %1331 = vmatprep.subr.bf16.mxu0 0
    %1332 = vmatpush1.bf16.msra.mxu0 0
    %1333 = vmatprep.subr.bf16.mxu0 0
    %1334 = vmatpush1.bf16.msra.mxu0 0
    %1335 = vmatprep.subr.bf16.mxu0 0
    %1336 = vmatpush1.bf16.msra.mxu0 0
    %1337 = vmatprep.subr.bf16.mxu0 0
    %1338 = vmatpush1.bf16.msra.mxu0 0
    %1339 = vmatprep.subr.bf16.mxu0 0
    %1340 = vmatpush1.bf16.msra.mxu0 0
    %1341 = vmatprep.subr.bf16.mxu0 0
    %1342 = vmatpush1.bf16.msra.mxu0 0
    %1343 = vmatprep.subr.bf16.mxu0 0
    %1344 = vmatpush1.bf16.msra.mxu0 0
    %1345 = vmatprep.subr.bf16.mxu0 0
    %1346 = vmatpush1.bf16.msra.mxu0 0
    %1347 = vmatprep.mubr.bf16.mxu0 0
    %1348 = vmatmul.mubr.bf16.gmra.mrb[0].mxu0 %v1313
    %v1349 = vpop.f32.mrb[0].mxu0
    %v1350 = vadd.f32 %v322, %v1349
    %v1351 = vpop.f32.mrb[0].mxu0
    %v1352 = vpop.f32.mrb[0].mxu0
    %v1353 = vpop.f32.mrb[0].mxu0
    %1354 = vdwg.mxu0
    %v1355 = vxor.u32 %v1350, 2147483648
    %v1356 = vmul.f32 %v1355, 1.442695
    %v1357 = vpow.pop %v1356
    %v1358 = vadd.f32 %v1357, 1.0
    %v1359 = vrcp.pop %v1358
    %v1360 = vmul.f32 1.0, %v1359
    %v1361 = vtanh.pop %v1350
    %v1362 = vmul.f32 %v1360, %v1200
    %1364 = vrot.lane.b32.xlu0 %v1361, 64
    %v1365 = vpop.permute.xlu0 %1364
    %v1367 = vmul.f32 %v1360, %v1365
    %1369 = vrot.lane.b32.xlu0 %v1367, 32
    %v1370 = vpop.permute.xlu0 %1369
    %v1372 = vadd.f32 %v1362, %v1370
    %v1373 = vtanh.pop %v1372
    %1375 = vrot.lane.b32.xlu0 %v1373, 64
    %v1376 = vpop.permute.xlu0 %1375
    %v1378 = vmul.f32 %v1360, %v1376
    %1380 = vrot.lane.b32.xlu0 %v1378, 64
    %v1381 = vpop.permute.xlu0 %1380
    %v1383 = vsel %vm315, %v1294, %v1381
    %v1384 = vpack.c.bf16 %v1383, %v1383
    %v1386 = vsel %vm348, %v1384, 0
    %1388 = vmatprep.subr.bf16.mxu0 0
    %1389 = vmatpush1.bf16.msra.mxu0 %v340
    %1390 = vmatprep.subr.bf16.mxu0 0
    %1391 = vmatpush1.bf16.msra.mxu0 %v341
    %1392 = vmatprep.subr.bf16.mxu0 0
    %1393 = vmatpush1.bf16.msra.mxu0 %v342
    %1394 = vmatprep.subr.bf16.mxu0 0
    %1395 = vmatpush1.bf16.msra.mxu0 %v343
    %1396 = vmatprep.subr.bf16.mxu0 0
    %1397 = vmatpush1.bf16.msra.mxu0 0
    %1398 = vmatprep.subr.bf16.mxu0 0
    %1399 = vmatpush1.bf16.msra.mxu0 0
    %1400 = vmatprep.subr.bf16.mxu0 0
    %1401 = vmatpush1.bf16.msra.mxu0 0
    %1402 = vmatprep.subr.bf16.mxu0 0
    %1403 = vmatpush1.bf16.msra.mxu0 0
    %1404 = vmatprep.subr.bf16.mxu0 0
    %1405 = vmatpush1.bf16.msra.mxu0 0
    %1406 = vmatprep.subr.bf16.mxu0 0
    %1407 = vmatpush1.bf16.msra.mxu0 0
    %1408 = vmatprep.subr.bf16.mxu0 0
    %1409 = vmatpush1.bf16.msra.mxu0 0
    %1410 = vmatprep.subr.bf16.mxu0 0
    %1411 = vmatpush1.bf16.msra.mxu0 0
    %1412 = vmatprep.subr.bf16.mxu0 0
    %1413 = vmatpush1.bf16.msra.mxu0 0
    %1414 = vmatprep.subr.bf16.mxu0 0
    %1415 = vmatpush1.bf16.msra.mxu0 0
    %1416 = vmatprep.subr.bf16.mxu0 0
    %1417 = vmatpush1.bf16.msra.mxu0 0
    %1418 = vmatprep.subr.bf16.mxu0 0
    %1419 = vmatpush1.bf16.msra.mxu0 0
    %1420 = vmatprep.mubr.bf16.mxu0 0
    %1421 = vmatmul.mubr.bf16.gmra.mrb[0].mxu0 %v1386
    %v1422 = vpop.f32.mrb[0].mxu0
    %v1423 = vadd.f32 %v322, %v1422
    %v1424 = vpop.f32.mrb[0].mxu0
    %v1425 = vpop.f32.mrb[0].mxu0
    %v1426 = vpop.f32.mrb[0].mxu0
    %1427 = vdwg.mxu0
    %v1428 = vxor.u32 %v1423, 2147483648
    %v1429 = vmul.f32 %v1428, 1.442695
    %v1430 = vpow.pop %v1429
    %v1431 = vadd.f32 %v1430, 1.0
    %v1432 = vrcp.pop %v1431
    %v1433 = vmul.f32 1.0, %v1432
    %v1434 = vtanh.pop %v1423
    %v1435 = vmul.f32 %v1433, %v1372
    %1437 = vrot.lane.b32.xlu0 %v1434, 64
    %v1438 = vpop.permute.xlu0 %1437
    %v1440 = vmul.f32 %v1433, %v1438
    %1442 = vrot.lane.b32.xlu0 %v1440, 32
    %v1443 = vpop.permute.xlu0 %1442
    %v1445 = vadd.f32 %v1435, %v1443
    %v1446 = vtanh.pop %v1445
    %1448 = vrot.lane.b32.xlu0 %v1446, 64
    %v1449 = vpop.permute.xlu0 %1448
    %v1451 = vmul.f32 %v1433, %v1449
    %1453 = vrot.lane.b32.xlu0 %v1451, 32
    %v1454 = vpop.permute.xlu0 %1453
    %s1456 = scalar_lea.vmem [#allocation11], 2
    %1457 = vst.msk [vmem:[%s1456] sm:$0x3] %vm1296, %v1454
    %1459 = vrot.lane.b32.xlu0 %v1445, 96
    %v1460 = vpop.permute.xlu0 %1459
    %s1462 = scalar_lea.vmem [#allocation13], 2
    %1463 = vst.msk [vmem:[%s1462] sm:$0x3] %vm1296, %v1460
    %v1464 = vmax.f32 %v1451, 0.0
    %v1465 = vpack.c.bf16 %v1464, %v1464
    %v1466 = vld [vmem:[%s7] sm:$0xf]
    %v1467 = vld [vmem:[%s7 + $0x4] sm:$0xf]
    %v1468 = vld [vmem:[%s7 + $0x8] sm:$0xf]
    %v1469 = vld [vmem:[%s7 + $0xc] sm:$0xf]
    %v1470 = vld [vmem:[%s8] sm:$0x1]
    %v1472 = vlaneseq
    %v1473 = vshrl.u32 %v1472, 7
    %v1474 = vsub.s32 0, %v1473
    %v1475 = vrot.slane %v1470, %v1474
    %1478 = vrot.lane.b32.xlu0 %v1465, 32
    %v1479 = vpop.permute.xlu0 %1478
    %v1484 = vunpack.c.l.b16 %v1466
    %v1485 = vunpack.c.l.b16 %v1467
    %v1486 = vunpack.c.l.b16 %v1468
    %v1487 = vunpack.c.l.b16 %v1469
    %v1488 = vpack.c.b16 %v1485, %v1484
    %v1489 = vpack.c.b16 %v1487, %v1486
    %v1493 = vsel %vm315, %v1479, 0
    %1495 = vmatprep.subr.bf16.mxu0 0
    %1496 = vmatpush1.bf16.msra.mxu0 %v1488
    %1497 = vmatprep.subr.bf16.mxu0 0
    %1498 = vmatpush1.bf16.msra.mxu0 %v1489
    %1499 = vmatprep.subr.bf16.mxu0 0
    %1500 = vmatpush1.bf16.msra.mxu0 0
    %1501 = vmatprep.subr.bf16.mxu0 0
    %1502 = vmatpush1.bf16.msra.mxu0 0
    %1503 = vmatprep.subr.bf16.mxu0 0
    %1504 = vmatpush1.bf16.msra.mxu0 0
    %1505 = vmatprep.subr.bf16.mxu0 0
    %1506 = vmatpush1.bf16.msra.mxu0 0
    %1507 = vmatprep.subr.bf16.mxu0 0
    %1508 = vmatpush1.bf16.msra.mxu0 0
    %1509 = vmatprep.subr.bf16.mxu0 0
    %1510 = vmatpush1.bf16.msra.mxu0 0
    %1511 = vmatprep.subr.bf16.mxu0 0
    %1512 = vmatpush1.bf16.msra.mxu0 0
    %1513 = vmatprep.subr.bf16.mxu0 0
    %1514 = vmatpush1.bf16.msra.mxu0 0
    %1515 = vmatprep.subr.bf16.mxu0 0
    %1516 = vmatpush1.bf16.msra.mxu0 0
    %1517 = vmatprep.subr.bf16.mxu0 0
    %1518 = vmatpush1.bf16.msra.mxu0 0
    %1519 = vmatprep.subr.bf16.mxu0 0
    %1520 = vmatpush1.bf16.msra.mxu0 0
    %1521 = vmatprep.subr.bf16.mxu0 0
    %1522 = vmatpush1.bf16.msra.mxu0 0
    %1523 = vmatprep.subr.bf16.mxu0 0
    %1524 = vmatpush1.bf16.msra.mxu0 0
    %1525 = vmatprep.subr.bf16.mxu0 0
    %1526 = vmatpush1.bf16.msra.mxu0 0
    %1527 = vmatprep.mubr.bf16.mxu0 0
    %1528 = vmatmul.mubr.bf16.gmra.mrb[0].mxu0 %v1493
    %v1529 = vpop.f32.mrb[0].mxu0
    %v1530 = vadd.f32 %v1475, %v1529
    %v1531 = vpop.f32.mrb[0].mxu0
    %v1532 = vpop.f32.mrb[0].mxu0
    %v1533 = vpop.f32.mrb[0].mxu0
    %1534 = vdwg.mxu0
    %vm1535 = vcmask 25600
    %1536 = vst.msk [vmem:[#allocation10] sm:$0x3] %vm1535, %v1530
    // Predicated region
    $region54: #{tpu_custom_call.1} parent=1 // pred_check
      _
    $region55: #{tpu_custom_call.1} parent=1 // pred_check_branch
      %1538 = sbr.rel (0) target = $region57
    $region56: #{tpu_custom_call.1} parent=1 // pred_region
      %s1540 = ssub.s32 32, 32
      %1541 = vsyncadd [#allocation4], %s1540
      %s1543 = sshll.u32 [#allocation10], 4
      %s1544 = int_to_ptr.vmem [resolvable:$true] %s1543
      %1546 = dma.vmem_to_hbm [thread:$0]  %s1544, 32, %s9, [#allocation4]
    $region57: #{tpu_custom_call.1} parent=1 // pred_fallthru
      _
    // Predicated region
    $region58: #{tpu_custom_call.1} parent=1 // pred_check
      _
    $region59: #{tpu_custom_call.1} parent=1 // pred_check_branch
      %1548 = sbr.rel (0) target = $region61
    $region60: #{tpu_custom_call.1} parent=1 // pred_region
      %s1550 = ssub.s32 64, 64
      %1551 = vsyncadd [#allocation12], %s1550
      %s1552 = sshll.u32 [#allocation11], 4
      %s1553 = int_to_ptr.vmem [resolvable:$true] %s1552
      %1558 = dma.vmem_to_hbm [thread:$0]  %s1553, 64, %s10, [#allocation12], 32, 32, 2
    $region61: #{tpu_custom_call.1} parent=1 // pred_fallthru
      _
    // Predicated region
    $region62: #{tpu_custom_call.1} parent=1 // pred_check
      _
    $region63: #{tpu_custom_call.1} parent=1 // pred_check_branch
      %1560 = sbr.rel (0) target = $region65
    $region64: #{tpu_custom_call.1} parent=1 // pred_region
      %s1562 = ssub.s32 64, 64
      %1563 = vsyncadd [#allocation12], %s1562
      %s1564 = sshll.u32 [#allocation13], 4
      %s1565 = int_to_ptr.vmem [resolvable:$true] %s1564
      %1570 = dma.vmem_to_hbm [thread:$0]  %s1565, 64, %s11, [#allocation12], 32, 32, 2
    $region65: #{tpu_custom_call.1} parent=1 // pred_fallthru
      _
    // Predicated region
    $region66: #{tpu_custom_call.1} parent=1 // pred_check
      _
    $region67: #{tpu_custom_call.1} parent=1 // pred_check_branch
      %1572 = sbr.rel (0) target = $region69
    $region68: #{tpu_custom_call.1} parent=1 // pred_region
      %1573 = dma.done [#allocation4], 32
    $region69: #{tpu_custom_call.1} parent=1 // pred_fallthru
      _
    // Predicated region
    $region70: #{tpu_custom_call.1} parent=1 // pred_check
      _
    $region71: #{tpu_custom_call.1} parent=1 // pred_check_branch
      %1575 = sbr.rel (0) target = $region73
    $region72: #{tpu_custom_call.1} parent=1 // pred_region
      %1576 = dma.done [#allocation12], 64
    $region73: #{tpu_custom_call.1} parent=1 // pred_fallthru
      _
    // Predicated region
    $region74: #{tpu_custom_call.1} parent=1 // pred_check
      _
    $region75: #{tpu_custom_call.1} parent=1 // pred_check_branch
      %1578 = sbr.rel (0) target = $region77
    $region76: #{tpu_custom_call.1} parent=1 // pred_region
      %1579 = dma.done [#allocation12], 64
    $region77: #{tpu_custom_call.1} parent=1 // pred_fallthru
      _
    %1580 = vsyncpa [#allocation3], 1
    %1581 = vsyncpa [#allocation6], 1
    %1582 = vsyncpa [#allocation9], 1
    %1583 = vsyncpa [#allocation4], 1
    %1584 = vsyncpa [#allocation12], 1

</llo_original>
